<compile_context>
chip_gen: v5e
topology: v5e:2x2
jax: 0.10.0
libtpu: 0.0.40
codegen_flags: <defaults>
</compile_context>

<pallas_src>
import functools
import math

import jax
import jax.numpy as jnp
from jax.experimental import pallas as pl
from jax.experimental.pallas import tpu as pltpu


# ----------------------------------------------------------------------------
# Attention core (ScaledDotProductAttention_ViTNO), heads batched per grid step.
# Q arrives pre-scaled (1/scale folded into W_q), so no scaling pass here.
# ----------------------------------------------------------------------------
def _attention_kernel(q_ref, k_ref, v_ref, o_ref, *, mxu_dtype):
    # blocks: (1, H, P, F)
    q = q_ref[0].astype(mxu_dtype)                                  # (H, P, F)
    k = k_ref[0].astype(mxu_dtype)
    v = v_ref[0].astype(mxu_dtype)

    scores = jnp.einsum('hpf,hqf->hpq', q, k,
                        preferred_element_type=jnp.float32)         # (H, P, P) f32

    # softmax statistics in f32
    m = jnp.max(scores, axis=-1, keepdims=True)                     # (H, P, 1)
    e = jnp.exp(scores - m)                                         # (H, P, P) f32 (EUP)
    denom = jnp.sum(e, axis=-1, keepdims=True)                      # (H, P, 1)

    # Deferred normalization: contract un-normalized probabilities with V,
    # then scale the (H, P, F) output by 1/denom once.
    out = jnp.einsum('hpq,hqf->hpf', e.astype(mxu_dtype), v,
                     preferred_element_type=jnp.float32)            # (H, P, F) f32

    if mxu_dtype == jnp.float32:
        inv = 1.0 / denom                     # exact divide for the tight f32 check
    else:
        inv = pl.reciprocal(denom, approx=True)   # EUP slot, essentially free
    o_ref[0] = (out * inv).astype(o_ref.dtype)


def attention_pallas(q, k, v, *, mxu_dtype=jnp.bfloat16):
    """q, k, v: (B, H, P, F) -> attention output (B, H, P, F)."""
    B, H, P, F = q.shape
    kernel = functools.partial(_attention_kernel, mxu_dtype=mxu_dtype)
    blk = pl.BlockSpec((1, H, P, F), lambda b: (b, 0, 0, 0))
    return pl.pallas_call(
        kernel,
        out_shape=jax.ShapeDtypeStruct((B, H, P, F), q.dtype),
        grid=(B,),                      # all heads per step; B remains a parallel axis
        in_specs=[blk, blk, blk],
        out_specs=blk,                  # lane axis = F (lane-dense stores)
        compiler_params=pltpu.CompilerParams(
            dimension_semantics=("parallel",),
            vmem_limit_bytes=32 * 1024 * 1024),
    )(q, k, v)


# ----------------------------------------------------------------------------
# Linear (bias) projection kernel for W_q/W_k/W_v (fused) and W_o
# ----------------------------------------------------------------------------
def _linear_kernel(x_ref, w_ref, b_ref, o_ref):
    o_ref[...] = (jnp.dot(x_ref[...], w_ref[...],
                          preferred_element_type=jnp.float32)
                  + b_ref[...]).astype(o_ref.dtype)


def _pick_row_tile(n):
    for t in (512, 256, 128, 64, 32, 16, 8):
        if n % t == 0:
            return t
    return n


def linear_pallas(x2d, w, b2d):
    """x2d: (N, Din) @ w: (Din, Dout) + b2d: (1, Dout) -> (N, Dout)."""
    N, Din = x2d.shape
    Dout = w.shape[1]
    tn = _pick_row_tile(N)
    return pl.pallas_call(
        _linear_kernel,
        out_shape=jax.ShapeDtypeStruct((N, Dout), x2d.dtype),
        grid=(N // tn,),
        in_specs=[
            pl.BlockSpec((tn, Din), lambda i: (i, 0)),
            pl.BlockSpec((Din, Dout), lambda i: (0, 0)),
            pl.BlockSpec((1, Dout), lambda i: (0, 0)),
        ],
        out_specs=pl.BlockSpec((tn, Dout), lambda i: (i, 0)),
        compiler_params=pltpu.CompilerParams(
            dimension_semantics=("parallel",)),
    )(x2d, w, b2d)


# ----------------------------------------------------------------------------
# Static weight re-arrangements (trace-time, tiny)
# ----------------------------------------------------------------------------
def _head_major_rows(W, b, H, d_k):
    """Reorder Linear *output* channels from torch order (o = dk*H + h) to
    head-major order (c = h*d_k + dk).  W is the torch (out, in) weight."""
    d_out, d_in = W.shape
    W_hm = W.reshape(d_k, H, d_in).transpose(1, 0, 2).reshape(d_out, d_in)
    b_hm = b.reshape(d_k, H).T.reshape(d_out)
    return W_hm, b_hm


def _head_major_cols(W, H, d_k):
    """Reorder Linear *input* channels of W_o to match head-major activations."""
    d_out, d_in = W.shape
    return W.reshape(d_out, d_k, H).transpose(0, 2, 1).reshape(d_out, d_in)


# ----------------------------------------------------------------------------
# Full MultiheadAttention_ViTNO forward
# ----------------------------------------------------------------------------
@functools.partial(jax.jit, static_argnames=("nhead", "im_size", "mxu_dtype"))
def multihead_attention_vitno(x, params, *, nhead, im_size, mxu_dtype=jnp.bfloat16):
    """x: (B, P, ps, ps, d_model) -> (B, P, ps, ps, d_model)."""
    Wq, bq, Wk, bk, Wv, bv, Wo, bo = params
    B, P, ps, ps2, d_model = x.shape
    H = nhead
    d_k = d_model // H
    F = ps * ps2 * d_k
    N = B * P * ps * ps2

    scale = float(im_size) ** 2          # == sqrt(im_size**4)

    # Head-major channel order; fold 1/scale into the Q projection.
    Wq_hm, bq_hm = _head_major_rows(Wq, bq, H, d_k)
    Wk_hm, bk_hm = _head_major_rows(Wk, bk, H, d_k)
    Wv_hm, bv_hm = _head_major_rows(Wv, bv, H, d_k)
    Wq_hm = Wq_hm / scale
    bq_hm = bq_hm / scale
    Wo_hm = _head_major_cols(Wo, H, d_k)

    x2d = x.reshape(N, d_model)

    # Fused QKV projection: one Pallas GEMM with 3*d_model output lanes.
    w_qkv = jnp.concatenate([Wq_hm.T, Wk_hm.T, Wv_hm.T], axis=1)    # (d_model, 3*d_model)
    b_qkv = jnp.concatenate([bq_hm, bk_hm, bv_hm]).reshape(1, -1)   # (1, 3*d_model)
    qkv = linear_pallas(x2d, w_qkv, b_qkv)                          # (N, 3*d_model)
    q_p, k_p, v_p = jnp.split(qkv, 3, axis=-1)

    def split_heads(t):
        # channels are head-major (c = h*d_k + dk) -> contiguous per-head chunks
        t = t.reshape(B, P, ps, ps2, H, d_k)
        t = jnp.transpose(t, (0, 4, 1, 2, 3, 5))                    # (B, H, P, ps, ps, d_k)
        return t.reshape(B, H, P, F)                                # flatten (x, y, d_k)

    q = split_heads(q_p)
    k = split_heads(k_p)
    v = split_heads(v_p)

    attn = attention_pallas(q, k, v, mxu_dtype=mxu_dtype)           # (B, H, P, F)

    # combine_heads, head-major channel layout matching Wo_hm.
    a = attn.reshape(B, H, P, ps, ps2, d_k)
    a = jnp.transpose(a, (0, 2, 3, 4, 1, 5))                        # (B, P, ps, ps, H, d_k)
    a = a.reshape(N, H * d_k)

    out = linear_pallas(a, Wo_hm.T, bo.reshape(1, -1))              # (N, d_model)
    return out.reshape(B, P, ps, ps2, d_model)


# ----------------------------------------------------------------------------
# Pure-JAX reference (transcription of the torch module, eval mode, no mask)
# ----------------------------------------------------------------------------
def _reference(x, params, *, nhead, im_size):
    Wq, bq, Wk, bk, Wv, bv, Wo, bo = params
    B, P, ps, ps2, d_model = x.shape
    H = nhead
    d_k = d_model // H

    def lin(t, W, b):
        return t @ W.T + b

    def split_heads(t):
        return jnp.transpose(t.reshape(B, P, ps, ps2, d_k, H), (0, 5, 1, 2, 3, 4))

    Q = split_heads(lin(x, Wq, bq))
    K = split_heads(lin(x, Wk, bk))
    V = split_heads(lin(x, Wv, bv))

    scale = math.sqrt(float(im_size) ** 4)
    scores = jnp.einsum('bnpxyd,bnqxyd->bnpq', Q, K) / scale
    attn = jax.nn.softmax(scores, axis=-1)
    out = jnp.einsum('bnpq,bnqxyd->bnpxyd', attn, V)
    out = jnp.transpose(out, (0, 2, 3, 4, 5, 1))                    # (B, P, ps, ps, d_k, H)
    comb = out.reshape(B, P, ps, ps2, H * d_k)
    return lin(comb, Wo, bo)


if __name__ == "__main__":
    # small ViT-NO-ish shapes: 16x16 image, 4x4 patches -> 16 patches, d_model=32, 4 heads
    B, P, ps, d_model, H, im_size = 2, 16, 4, 32, 4, 16

    key = jax.random.PRNGKey(0)
    keys = jax.random.split(key, 9)
    x = jax.random.normal(keys[0], (B, P, ps, ps, d_model), jnp.float32)

    def init_linear(kw, kb, din, dout):
        lim = 1.0 / math.sqrt(din)
        W = jax.random.uniform(kw, (dout, din), jnp.float32, minval=-lim, maxval=lim)
        b = jax.random.uniform(kb, (dout,), jnp.float32, minval=-lim, maxval=lim)
        return W, b

    Wq, bq = init_linear(keys[1], keys[2], d_model, d_model)
    Wk, bk = init_linear(keys[3], keys[4], d_model, d_model)
    Wv, bv = init_linear(keys[5], keys[6], d_model, d_model)
    Wo, bo = init_linear(keys[7], keys[8], d_model, d_model)
    params = (Wq, bq, Wk, bk, Wv, bv, Wo, bo)

    ref = _reference(x, params, nhead=H, im_size=im_size)

    # exact-math variant (f32 MXU operands) — tight check
    out_f32 = multihead_attention_vitno(x, params, nhead=H, im_size=im_size,
                                        mxu_dtype=jnp.float32)
    out_f32 = jax.block_until_ready(out_f32)
    assert out_f32.shape == (B, P, ps, ps, d_model)
    assert jnp.allclose(out_f32, ref, atol=1e-4, rtol=1e-4), "f32 kernel mismatch vs reference"

    # performance variant (bf16 MXU operands, f32 softmax/accumulation) — loose check
    out_bf16 = multihead_attention_vitno(x, params, nhead=H, im_size=im_size,
                                         mxu_dtype=jnp.bfloat16)
    out_bf16 = jax.block_until_ready(out_bf16)
    assert jnp.allclose(out_bf16, ref, atol=3e-2, rtol=3e-2), "bf16 kernel mismatch vs reference"

    print("KERNEL_OK")
</pallas_src>

<mosaic_0001>
module attributes {stable_mosaic.version = 11 : i64} {
  func.func @_linear_kernel(%arg0: i32, %arg1: memref<512x32xf32, #tpu.memory_space<vmem>>, %arg2: memref<32x96xf32, #tpu.memory_space<vmem>>, %arg3: memref<1x96xf32, #tpu.memory_space<vmem>>, %arg4: memref<512x96xf32, #tpu.memory_space<vmem>>) attributes {dimension_semantics = [#tpu.dimension_semantics<parallel>], iteration_bounds = array<i64: 1>, scalar_prefetch = 0 : i64, scratch_operands = 0 : i64, tpu.core_type = #tpu.core_type<tc>, window_params = [{transform_indices = @transform_0, window_bounds = array<i64: 512, 32>}, {pipeline_mode = #tpu.pipeline_mode<synchronous>, transform_indices = @transform_1, window_bounds = array<i64: 32, 96>}, {pipeline_mode = #tpu.pipeline_mode<synchronous>, transform_indices = @transform_2, window_bounds = array<i64: 1, 96>}, {transform_indices = @transform_3, window_bounds = array<i64: 512, 96>}]} {
    %c0 = arith.constant 0 : index
    %c0_0 = arith.constant 0 : index
    %0 = vector.load %arg1[%c0, %c0_0] : memref<512x32xf32, #tpu.memory_space<vmem>>, vector<512x32xf32>
    %c0_1 = arith.constant 0 : index
    %c0_2 = arith.constant 0 : index
    %1 = vector.load %arg2[%c0_1, %c0_2] : memref<32x96xf32, #tpu.memory_space<vmem>>, vector<32x96xf32>
    %cst = arith.constant dense<0.000000e+00> : vector<512x96xf32>
    %2 = tpu.matmul %0, %1, %cst {dimension_numbers = #tpu.dot_dimension_numbers<[1], [0], [0], [1], [0, 0, 1, 1], [], []>} : vector<512x32xf32>, vector<32x96xf32>, vector<512x96xf32> -> vector<512x96xf32>
    %c0_3 = arith.constant 0 : index
    %c0_4 = arith.constant 0 : index
    %3 = vector.load %arg3[%c0_3, %c0_4] : memref<1x96xf32, #tpu.memory_space<vmem>>, vector<1x96xf32>
    %4 = vector.broadcast %3 : vector<1x96xf32> to vector<512x96xf32>
    %5 = arith.addf %2, %4 : vector<512x96xf32>
    %c0_5 = arith.constant 0 : index
    %c0_6 = arith.constant 0 : index
    %6 = vector.load %arg4[%c0_5, %c0_6] : memref<512x96xf32, #tpu.memory_space<vmem>>, vector<512x96xf32>
    tpu.vector_store %arg4[%c0_5, %c0_6], %5 {strides = array<i32>} : memref<512x96xf32, #tpu.memory_space<vmem>>, vector<512x96xf32>,
    return
  }
  func.func @transform_0(%arg0: i32) -> (i32, i32) {
    %c0_i32 = arith.constant 0 : i32
    %c0_i32_0 = arith.constant 0 : i32
    return %arg0, %c0_i32 : i32, i32
  }
  func.func @transform_1(%arg0: i32) -> (i32, i32) {
    %c0_i32 = arith.constant 0 : i32
    %c0_i32_0 = arith.constant 0 : i32
    %c0_i32_1 = arith.constant 0 : i32
    return %c0_i32, %c0_i32_0 : i32, i32
  }
  func.func @transform_2(%arg0: i32) -> (i32, i32) {
    %c0_i32 = arith.constant 0 : i32
    %c0_i32_0 = arith.constant 0 : i32
    %c0_i32_1 = arith.constant 0 : i32
    return %c0_i32, %c0_i32_0 : i32, i32
  }
  func.func @transform_3(%arg0: i32) -> (i32, i32) {
    %c0_i32 = arith.constant 0 : i32
    %c0_i32_0 = arith.constant 0 : i32
    return %arg0, %c0_i32 : i32, i32
  }
}

module attributes {stable_mosaic.version = 11 : i64} {
  func.func @_attention_kernel(%arg0: i32, %arg1: memref<1x4x16x128xf32, #tpu.memory_space<vmem>>, %arg2: memref<1x4x16x128xf32, #tpu.memory_space<vmem>>, %arg3: memref<1x4x16x128xf32, #tpu.memory_space<vmem>>, %arg4: memref<1x4x16x128xf32, #tpu.memory_space<vmem>>) attributes {dimension_semantics = [#tpu.dimension_semantics<parallel>], iteration_bounds = array<i64: 2>, scalar_prefetch = 0 : i64, scratch_operands = 0 : i64, tpu.core_type = #tpu.core_type<tc>, window_params = [{transform_indices = @transform_0, window_bounds = array<i64: 1, 4, 16, 128>}, {transform_indices = @transform_1, window_bounds = array<i64: 1, 4, 16, 128>}, {transform_indices = @transform_2, window_bounds = array<i64: 1, 4, 16, 128>}, {transform_indices = @transform_3, window_bounds = array<i64: 1, 4, 16, 128>}]} {
    %c0 = arith.constant 0 : index
    %c0_0 = arith.constant 0 : index
    %c0_1 = arith.constant 0 : index
    %c0_2 = arith.constant 0 : index
    %0 = vector.load %arg1[%c0, %c0_0, %c0_1, %c0_2] : memref<1x4x16x128xf32, #tpu.memory_space<vmem>>, vector<1x4x16x128xf32>
    %1 = vector.shape_cast %0 : vector<1x4x16x128xf32> to vector<4x16x128xf32>
    %c0_3 = arith.constant 0 : index
    %c0_4 = arith.constant 0 : index
    %c0_5 = arith.constant 0 : index
    %c0_6 = arith.constant 0 : index
    %2 = vector.load %arg2[%c0_3, %c0_4, %c0_5, %c0_6] : memref<1x4x16x128xf32, #tpu.memory_space<vmem>>, vector<1x4x16x128xf32>
    %3 = vector.shape_cast %2 : vector<1x4x16x128xf32> to vector<4x16x128xf32>
    %c0_7 = arith.constant 0 : index
    %c0_8 = arith.constant 0 : index
    %c0_9 = arith.constant 0 : index
    %c0_10 = arith.constant 0 : index
    %4 = vector.load %arg3[%c0_7, %c0_8, %c0_9, %c0_10] : memref<1x4x16x128xf32, #tpu.memory_space<vmem>>, vector<1x4x16x128xf32>
    %5 = vector.shape_cast %4 : vector<1x4x16x128xf32> to vector<4x16x128xf32>
    "tpu.trace_start"() <{level = 10 : i32, message = "hpf,hqf->hpq"}> : () -> ()
    %cst = arith.constant dense<0.000000e+00> : vector<4x16x16xf32>
    %6 = tpu.matmul %1, %3, %cst {dimension_numbers = #tpu.dot_dimension_numbers<[2], [2], [1], [1], [0, 0, 0, 1, 1, 1], [0], [0]>} : vector<4x16x128xf32>, vector<4x16x128xf32>, vector<4x16x16xf32> -> vector<4x16x16xf32>
    "tpu.trace_stop"() : () -> ()
    %cst_11 = arith.constant dense<0xFF800000> : vector<4x16xf32>
    %7 = vector.multi_reduction <maximumf>, %6, %cst_11 [2] : vector<4x16x16xf32> to vector<4x16xf32>
    %8 = vector.shape_cast %7 : vector<4x16xf32> to vector<4x16x1xf32>
    %9 = vector.broadcast %8 : vector<4x16x1xf32> to vector<4x16x16xf32>
    %10 = arith.subf %6, %9 : vector<4x16x16xf32>
    %11 = math.exp %10 : vector<4x16x16xf32>
    %cst_12 = arith.constant dense<0.000000e+00> : vector<4x16xf32>
    %12 = vector.multi_reduction <add>, %11, %cst_12 [2] : vector<4x16x16xf32> to vector<4x16xf32>
    %13 = vector.shape_cast %12 : vector<4x16xf32> to vector<4x16x1xf32>
    "tpu.trace_start"() <{level = 10 : i32, message = "hpq,hqf->hpf"}> : () -> ()
    %cst_13 = arith.constant dense<0.000000e+00> : vector<4x16x128xf32>
    %14 = tpu.matmul %11, %5, %cst_13 {dimension_numbers = #tpu.dot_dimension_numbers<[2], [1], [1], [2], [0, 0, 0, 1, 1, 2], [0], [0]>} : vector<4x16x16xf32>, vector<4x16x128xf32>, vector<4x16x128xf32> -> vector<4x16x128xf32>
    "tpu.trace_stop"() : () -> ()
    %cst_14 = arith.constant 1.000000e+00 : f32
    %15 = vector.broadcast %cst_14 : f32 to vector<4x16x1xf32>
    %16 = arith.divf %15, %13 : vector<4x16x1xf32>
    %17 = vector.broadcast %16 : vector<4x16x1xf32> to vector<4x16x128xf32>
    %18 = arith.mulf %14, %17 : vector<4x16x128xf32>
    %c0_15 = arith.constant 0 : index
    %c0_16 = arith.constant 0 : index
    %c0_17 = arith.constant 0 : index
    %c0_18 = arith.constant 0 : index
    %19 = vector.load %arg4[%c0_15, %c0_16, %c0_17, %c0_18] : memref<1x4x16x128xf32, #tpu.memory_space<vmem>>, vector<1x4x16x128xf32>
    %20 = vector.shape_cast %19 : vector<1x4x16x128xf32> to vector<4x16x128xf32>
    %21 = vector.shape_cast %18 : vector<4x16x128xf32> to vector<1x4x16x128xf32>
    tpu.vector_store %arg4[%c0_15, %c0_16, %c0_17, %c0_18], %21 {strides = array<i32>} : memref<1x4x16x128xf32, #tpu.memory_space<vmem>>, vector<1x4x16x128xf32>,
    return
  }
  func.func @transform_0(%arg0: i32) -> (i32, i32, i32, i32) {
    %c0_i32 = arith.constant 0 : i32
    %c0_i32_0 = arith.constant 0 : i32
    %c0_i32_1 = arith.constant 0 : i32
    %c0_i32_2 = arith.constant 0 : i32
    return %arg0, %c0_i32, %c0_i32_0, %c0_i32_1 : i32, i32, i32, i32
  }
  func.func @transform_1(%arg0: i32) -> (i32, i32, i32, i32) {
    %c0_i32 = arith.constant 0 : i32
    %c0_i32_0 = arith.constant 0 : i32
    %c0_i32_1 = arith.constant 0 : i32
    %c0_i32_2 = arith.constant 0 : i32
    return %arg0, %c0_i32, %c0_i32_0, %c0_i32_1 : i32, i32, i32, i32
  }
  func.func @transform_2(%arg0: i32) -> (i32, i32, i32, i32) {
    %c0_i32 = arith.constant 0 : i32
    %c0_i32_0 = arith.constant 0 : i32
    %c0_i32_1 = arith.constant 0 : i32
    %c0_i32_2 = arith.constant 0 : i32
    return %arg0, %c0_i32, %c0_i32_0, %c0_i32_1 : i32, i32, i32, i32
  }
  func.func @transform_3(%arg0: i32) -> (i32, i32, i32, i32) {
    %c0_i32 = arith.constant 0 : i32
    %c0_i32_0 = arith.constant 0 : i32
    %c0_i32_1 = arith.constant 0 : i32
    %c0_i32_2 = arith.constant 0 : i32
    return %arg0, %c0_i32, %c0_i32_0, %c0_i32_1 : i32, i32, i32, i32
  }
}

module attributes {stable_mosaic.version = 11 : i64} {
  func.func @_linear_kernel(%arg0: i32, %arg1: memref<512x32xf32, #tpu.memory_space<vmem>>, %arg2: memref<32x32xf32, #tpu.memory_space<vmem>>, %arg3: memref<1x32xf32, #tpu.memory_space<vmem>>, %arg4: memref<512x32xf32, #tpu.memory_space<vmem>>) attributes {dimension_semantics = [#tpu.dimension_semantics<parallel>], iteration_bounds = array<i64: 1>, scalar_prefetch = 0 : i64, scratch_operands = 0 : i64, tpu.core_type = #tpu.core_type<tc>, window_params = [{transform_indices = @transform_0, window_bounds = array<i64: 512, 32>}, {pipeline_mode = #tpu.pipeline_mode<synchronous>, transform_indices = @transform_1, window_bounds = array<i64: 32, 32>}, {pipeline_mode = #tpu.pipeline_mode<synchronous>, transform_indices = @transform_2, window_bounds = array<i64: 1, 32>}, {transform_indices = @transform_3, window_bounds = array<i64: 512, 32>}]} {
    %c0 = arith.constant 0 : index
    %c0_0 = arith.constant 0 : index
    %0 = vector.load %arg1[%c0, %c0_0] : memref<512x32xf32, #tpu.memory_space<vmem>>, vector<512x32xf32>
    %c0_1 = arith.constant 0 : index
    %c0_2 = arith.constant 0 : index
    %1 = vector.load %arg2[%c0_1, %c0_2] : memref<32x32xf32, #tpu.memory_space<vmem>>, vector<32x32xf32>
    %cst = arith.constant dense<0.000000e+00> : vector<512x32xf32>
    %2 = tpu.matmul %0, %1, %cst {dimension_numbers = #tpu.dot_dimension_numbers<[1], [0], [0], [1], [0, 0, 1, 1], [], []>} : vector<512x32xf32>, vector<32x32xf32>, vector<512x32xf32> -> vector<512x32xf32>
    %c0_3 = arith.constant 0 : index
    %c0_4 = arith.constant 0 : index
    %3 = vector.load %arg3[%c0_3, %c0_4] : memref<1x32xf32, #tpu.memory_space<vmem>>, vector<1x32xf32>
    %4 = vector.broadcast %3 : vector<1x32xf32> to vector<512x32xf32>
    %5 = arith.addf %2, %4 : vector<512x32xf32>
    %c0_5 = arith.constant 0 : index
    %c0_6 = arith.constant 0 : index
    %6 = vector.load %arg4[%c0_5, %c0_6] : memref<512x32xf32, #tpu.memory_space<vmem>>, vector<512x32xf32>
    tpu.vector_store %arg4[%c0_5, %c0_6], %5 {strides = array<i32>} : memref<512x32xf32, #tpu.memory_space<vmem>>, vector<512x32xf32>,
    return
  }
  func.func @transform_0(%arg0: i32) -> (i32, i32) {
    %c0_i32 = arith.constant 0 : i32
    %c0_i32_0 = arith.constant 0 : i32
    return %arg0, %c0_i32 : i32, i32
  }
  func.func @transform_1(%arg0: i32) -> (i32, i32) {
    %c0_i32 = arith.constant 0 : i32
    %c0_i32_0 = arith.constant 0 : i32
    %c0_i32_1 = arith.constant 0 : i32
    return %c0_i32, %c0_i32_0 : i32, i32
  }
  func.func @transform_2(%arg0: i32) -> (i32, i32) {
    %c0_i32 = arith.constant 0 : i32
    %c0_i32_0 = arith.constant 0 : i32
    %c0_i32_1 = arith.constant 0 : i32
    return %c0_i32, %c0_i32_0 : i32, i32
  }
  func.func @transform_3(%arg0: i32) -> (i32, i32) {
    %c0_i32 = arith.constant 0 : i32
    %c0_i32_0 = arith.constant 0 : i32
    return %arg0, %c0_i32 : i32, i32
  }
}

</mosaic_0001>

<llo_original>
// kernel: multihead_attention_vitno.3
$region0: #{multihead_attention_vitno.3}
  #allocation0 [shape = 'u32[]', space=smem, size = 0x4, offset = 0x4, fixed_abs, tag = 'smem constant byte address 0x4 - core index']
  #allocation1 [shape = 'u32[72,128]{1,0:T(1,128)}', space=vmem, size = 0x9000, scoped, tag = 'internal scratch']
  %s0 = inlined_call_operand.hbm [shape: f32[512,32], index: 0, kind: input, shape index: {}]
  %s1 = inlined_call_operand.vmem [shape: f32[32,96], index: 1, kind: input, shape index: {}]
  %s2 = inlined_call_operand.vmem [shape: f32[1,96], index: 2, kind: input, shape index: {}]
  %s3 = inlined_call_operand.vmem [shape: f32[512,96], index: 3, kind: output, shape index: {}]
  %s4 = sld [smem:[#allocation0]]
  $region26: #{multihead_attention_vitno.3} parent=0
    _
  %s6 = ssub.s32 1, %s4
  %s7 = scalar_select 0, %s6, %s4
  $region1: #{multihead_attention_vitno.3} parent=0
    #allocation2 [shape = 'u8[262144]{0}', space=vmem, size = 0x40000, scoped, tag = 'input window, operand 0, single buffered']
    #allocation3 [shape = 's32[1]{0}', space=sflag, size = 0x4, scoped, tag = 'scoped memory for multihead_attention_vitno.3']
    %8 = vsyncpa [#allocation3], 0
    // Predicated region
    $region2: #{multihead_attention_vitno.3} parent=1 // pred_check
      _
    $region3: #{multihead_attention_vitno.3} parent=1 // pred_check_branch
      %10 = sbr.rel (0) target = $region5
    $region4: #{multihead_attention_vitno.3} parent=1 // pred_region
      %12 = vsyncadd [#allocation3], 0
      %s13 = sshll.u32 %s0, 4
      %s14 = int_to_ptr.hbm [resolvable:$true] %s13
      %s15 = sshll.u32 [#allocation2], 4
      %s16 = int_to_ptr.vmem [resolvable:$true] %s15
      %21 = dma.hbm_to_vmem [thread:$0]  %s14, 8192, %s16, [#allocation3], 128, 128, 8
    $region5: #{multihead_attention_vitno.3} parent=1 // pred_fallthru
      _
    // Predicated region
    $region6: #{multihead_attention_vitno.3} parent=1 // pred_check
      _
    $region7: #{multihead_attention_vitno.3} parent=1 // pred_check_branch
      %23 = sbr.rel (0) target = $region9
    $region8: #{multihead_attention_vitno.3} parent=1 // pred_region
      _
    $region9: #{multihead_attention_vitno.3} parent=1 // pred_fallthru
      _
    // Predicated region
    $region10: #{multihead_attention_vitno.3} parent=1 // pred_check
      _
    $region11: #{multihead_attention_vitno.3} parent=1 // pred_check_branch
      %25 = sbr.rel (0) target = $region13
    $region12: #{multihead_attention_vitno.3} parent=1 // pred_region
      _
    $region13: #{multihead_attention_vitno.3} parent=1 // pred_fallthru
      _
    // Predicated region
    $region14: #{multihead_attention_vitno.3} parent=1 // pred_check
      _
    $region15: #{multihead_attention_vitno.3} parent=1 // pred_check_branch
      %27 = sbr.rel (0) target = $region17
    $region16: #{multihead_attention_vitno.3} parent=1 // pred_region
      %29 = dma.done [#allocation3], 8192
    $region17: #{multihead_attention_vitno.3} parent=1 // pred_fallthru
      _
    %v30 = vld [vmem:[#allocation2] sm:$0xff]
    %v31 = vld [vmem:[#allocation2 + $0x8] sm:$0xff]
    %v32 = vld [vmem:[#allocation2 + $0x10] sm:$0xff]
    %v33 = vld [vmem:[#allocation2 + $0x18] sm:$0xff]
    %v34 = vld [vmem:[#allocation2 + $0x20] sm:$0xff]
    %v35 = vld [vmem:[#allocation2 + $0x28] sm:$0xff]
    %v36 = vld [vmem:[#allocation2 + $0x30] sm:$0xff]
    %v37 = vld [vmem:[#allocation2 + $0x38] sm:$0xff]
    %v38 = vld [vmem:[#allocation2 + $0x40] sm:$0xff]
    %v39 = vld [vmem:[#allocation2 + $0x48] sm:$0xff]
    %v40 = vld [vmem:[#allocation2 + $0x50] sm:$0xff]
    %v41 = vld [vmem:[#allocation2 + $0x58] sm:$0xff]
    %v42 = vld [vmem:[#allocation2 + $0x60] sm:$0xff]
    %v43 = vld [vmem:[#allocation2 + $0x68] sm:$0xff]
    %v44 = vld [vmem:[#allocation2 + $0x70] sm:$0xff]
    %v45 = vld [vmem:[#allocation2 + $0x78] sm:$0xff]
    %v46 = vld [vmem:[#allocation2 + $0x80] sm:$0xff]
    %v47 = vld [vmem:[#allocation2 + $0x88] sm:$0xff]
    %v48 = vld [vmem:[#allocation2 + $0x90] sm:$0xff]
    %v49 = vld [vmem:[#allocation2 + $0x98] sm:$0xff]
    %v50 = vld [vmem:[#allocation2 + $0xa0] sm:$0xff]
    %v51 = vld [vmem:[#allocation2 + $0xa8] sm:$0xff]
    %v52 = vld [vmem:[#allocation2 + $0xb0] sm:$0xff]
    %v53 = vld [vmem:[#allocation2 + $0xb8] sm:$0xff]
    %v54 = vld [vmem:[#allocation2 + $0xc0] sm:$0xff]
    %v55 = vld [vmem:[#allocation2 + $0xc8] sm:$0xff]
    %v56 = vld [vmem:[#allocation2 + $0xd0] sm:$0xff]
    %v57 = vld [vmem:[#allocation2 + $0xd8] sm:$0xff]
    %v58 = vld [vmem:[#allocation2 + $0xe0] sm:$0xff]
    %v59 = vld [vmem:[#allocation2 + $0xe8] sm:$0xff]
    %v60 = vld [vmem:[#allocation2 + $0xf0] sm:$0xff]
    %v61 = vld [vmem:[#allocation2 + $0xf8] sm:$0xff]
    %v62 = vld [vmem:[#allocation2 + $0x100] sm:$0xff]
    %v63 = vld [vmem:[#allocation2 + $0x108] sm:$0xff]
    %v64 = vld [vmem:[#allocation2 + $0x110] sm:$0xff]
    %v65 = vld [vmem:[#allocation2 + $0x118] sm:$0xff]
    %v66 = vld [vmem:[#allocation2 + $0x120] sm:$0xff]
    %v67 = vld [vmem:[#allocation2 + $0x128] sm:$0xff]
    %v68 = vld [vmem:[#allocation2 + $0x130] sm:$0xff]
    %v69 = vld [vmem:[#allocation2 + $0x138] sm:$0xff]
    %v70 = vld [vmem:[#allocation2 + $0x140] sm:$0xff]
    %v71 = vld [vmem:[#allocation2 + $0x148] sm:$0xff]
    %v72 = vld [vmem:[#allocation2 + $0x150] sm:$0xff]
    %v73 = vld [vmem:[#allocation2 + $0x158] sm:$0xff]
    %v74 = vld [vmem:[#allocation2 + $0x160] sm:$0xff]
    %v75 = vld [vmem:[#allocation2 + $0x168] sm:$0xff]
    %v76 = vld [vmem:[#allocation2 + $0x170] sm:$0xff]
    %v77 = vld [vmem:[#allocation2 + $0x178] sm:$0xff]
    %v78 = vld [vmem:[#allocation2 + $0x180] sm:$0xff]
    %v79 = vld [vmem:[#allocation2 + $0x188] sm:$0xff]
    %v80 = vld [vmem:[#allocation2 + $0x190] sm:$0xff]
    %v81 = vld [vmem:[#allocation2 + $0x198] sm:$0xff]
    %v82 = vld [vmem:[#allocation2 + $0x1a0] sm:$0xff]
    %v83 = vld [vmem:[#allocation2 + $0x1a8] sm:$0xff]
    %v84 = vld [vmem:[#allocation2 + $0x1b0] sm:$0xff]
    %v85 = vld [vmem:[#allocation2 + $0x1b8] sm:$0xff]
    %v86 = vld [vmem:[#allocation2 + $0x1c0] sm:$0xff]
    %v87 = vld [vmem:[#allocation2 + $0x1c8] sm:$0xff]
    %v88 = vld [vmem:[#allocation2 + $0x1d0] sm:$0xff]
    %v89 = vld [vmem:[#allocation2 + $0x1d8] sm:$0xff]
    %v90 = vld [vmem:[#allocation2 + $0x1e0] sm:$0xff]
    %v91 = vld [vmem:[#allocation2 + $0x1e8] sm:$0xff]
    %v92 = vld [vmem:[#allocation2 + $0x1f0] sm:$0xff]
    %v93 = vld [vmem:[#allocation2 + $0x1f8] sm:$0xff]
    %v94 = vld [vmem:[%s1] sm:$0xff]
    %v95 = vld [vmem:[%s1 + $0x8] sm:$0xff]
    %v96 = vld [vmem:[%s1 + $0x10] sm:$0xff]
    %v97 = vld [vmem:[%s1 + $0x18] sm:$0xff]
    %v98 = vld [vmem:[%s2] sm:$0x1]
    %v100 = vperm.slane %v98, 0
    %vm102 = vcmask 261120
    %v104 = vsel %vm102, %v30, 0
    %v107 = vsel %vm102, %v31, 0
    %v110 = vsel %vm102, %v32, 0
    %v113 = vsel %vm102, %v33, 0
    %v116 = vsel %vm102, %v34, 0
    %v119 = vsel %vm102, %v35, 0
    %v122 = vsel %vm102, %v36, 0
    %v125 = vsel %vm102, %v37, 0
    %v128 = vsel %vm102, %v38, 0
    %v131 = vsel %vm102, %v39, 0
    %v134 = vsel %vm102, %v40, 0
    %v137 = vsel %vm102, %v41, 0
    %v140 = vsel %vm102, %v42, 0
    %v143 = vsel %vm102, %v43, 0
    %v146 = vsel %vm102, %v44, 0
    %v149 = vsel %vm102, %v45, 0
    %v152 = vsel %vm102, %v46, 0
    %v155 = vsel %vm102, %v47, 0
    %v158 = vsel %vm102, %v48, 0
    %v161 = vsel %vm102, %v49, 0
    %v164 = vsel %vm102, %v50, 0
    %v167 = vsel %vm102, %v51, 0
    %v170 = vsel %vm102, %v52, 0
    %v173 = vsel %vm102, %v53, 0
    %v176 = vsel %vm102, %v54, 0
    %v179 = vsel %vm102, %v55, 0
    %v182 = vsel %vm102, %v56, 0
    %v185 = vsel %vm102, %v57, 0
    %v188 = vsel %vm102, %v58, 0
    %v191 = vsel %vm102, %v59, 0
    %v194 = vsel %vm102, %v60, 0
    %v197 = vsel %vm102, %v61, 0
    %v200 = vsel %vm102, %v62, 0
    %v203 = vsel %vm102, %v63, 0
    %v206 = vsel %vm102, %v64, 0
    %v209 = vsel %vm102, %v65, 0
    %v212 = vsel %vm102, %v66, 0
    %v215 = vsel %vm102, %v67, 0
    %v218 = vsel %vm102, %v68, 0
    %v221 = vsel %vm102, %v69, 0
    %v224 = vsel %vm102, %v70, 0
    %v227 = vsel %vm102, %v71, 0
    %v230 = vsel %vm102, %v72, 0
    %v233 = vsel %vm102, %v73, 0
    %v236 = vsel %vm102, %v74, 0
    %v239 = vsel %vm102, %v75, 0
    %v242 = vsel %vm102, %v76, 0
    %v245 = vsel %vm102, %v77, 0
    %v248 = vsel %vm102, %v78, 0
    %v251 = vsel %vm102, %v79, 0
    %v254 = vsel %vm102, %v80, 0
    %v257 = vsel %vm102, %v81, 0
    %v260 = vsel %vm102, %v82, 0
    %v263 = vsel %vm102, %v83, 0
    %v266 = vsel %vm102, %v84, 0
    %v269 = vsel %vm102, %v85, 0
    %v272 = vsel %vm102, %v86, 0
    %v275 = vsel %vm102, %v87, 0
    %v278 = vsel %vm102, %v88, 0
    %v281 = vsel %vm102, %v89, 0
    %v284 = vsel %vm102, %v90, 0
    %v287 = vsel %vm102, %v91, 0
    %v290 = vsel %vm102, %v92, 0
    %v293 = vsel %vm102, %v93, 0
    %295 = vmatpush.msra.mxu0 0.0
    %296 = vmatpush.msra.mxu0 0.0
    %297 = vmatpush.msra.mxu0 0.0
    %298 = vmatpush.msra.mxu0 0.0
    %299 = vmatpush.msra.mxu0 0.0
    %300 = vmatpush.msra.mxu0 0.0
    %301 = vmatpush.msra.mxu0 0.0
    %302 = vmatpush.msra.mxu0 0.0
    %303 = vmatpush.msra.mxu0 0.0
    %304 = vmatpush.msra.mxu0 0.0
    %305 = vmatpush.msra.mxu0 0.0
    %306 = vmatpush.msra.mxu0 0.0
    %307 = vmatpush.msra.mxu0 %v97
    %308 = vmatpush.msra.mxu0 %v96
    %309 = vmatpush.msra.mxu0 %v95
    %310 = vmatpush.msra.mxu0 %v94
    %311 = vmatmul.f32.gmra.mxu0 %v104
    %v312 = vpop.f32.mrf.mxu0
    %v313 = vadd.f32 %v100, %v312
    %314 = vmatmul.f32.gmra.mxu0 %v107
    %v315 = vpop.f32.mrf.mxu0
    %v316 = vadd.f32 %v100, %v315
    %317 = vmatmul.f32.gmra.mxu0 %v110
    %v318 = vpop.f32.mrf.mxu0
    %v319 = vadd.f32 %v100, %v318
    %320 = vmatmul.f32.gmra.mxu0 %v113
    %v321 = vpop.f32.mrf.mxu0
    %v322 = vadd.f32 %v100, %v321
    %323 = vmatmul.f32.gmra.mxu0 %v116
    %v324 = vpop.f32.mrf.mxu0
    %v325 = vadd.f32 %v100, %v324
    %326 = vmatmul.f32.gmra.mxu0 %v119
    %v327 = vpop.f32.mrf.mxu0
    %v328 = vadd.f32 %v100, %v327
    %329 = vmatmul.f32.gmra.mxu0 %v122
    %v330 = vpop.f32.mrf.mxu0
    %v331 = vadd.f32 %v100, %v330
    %332 = vmatmul.f32.gmra.mxu0 %v125
    %v333 = vpop.f32.mrf.mxu0
    %v334 = vadd.f32 %v100, %v333
    %335 = vmatmul.f32.gmra.mxu0 %v128
    %v336 = vpop.f32.mrf.mxu0
    %v337 = vadd.f32 %v100, %v336
    %338 = vmatmul.f32.gmra.mxu0 %v131
    %v339 = vpop.f32.mrf.mxu0
    %v340 = vadd.f32 %v100, %v339
    %341 = vmatmul.f32.gmra.mxu0 %v134
    %v342 = vpop.f32.mrf.mxu0
    %v343 = vadd.f32 %v100, %v342
    %344 = vmatmul.f32.gmra.mxu0 %v137
    %v345 = vpop.f32.mrf.mxu0
    %v346 = vadd.f32 %v100, %v345
    %347 = vmatmul.f32.gmra.mxu0 %v140
    %v348 = vpop.f32.mrf.mxu0
    %v349 = vadd.f32 %v100, %v348
    %350 = vmatmul.f32.gmra.mxu0 %v143
    %v351 = vpop.f32.mrf.mxu0
    %v352 = vadd.f32 %v100, %v351
    %353 = vmatmul.f32.gmra.mxu0 %v146
    %v354 = vpop.f32.mrf.mxu0
    %v355 = vadd.f32 %v100, %v354
    %356 = vmatmul.f32.gmra.mxu0 %v149
    %v357 = vpop.f32.mrf.mxu0
    %v358 = vadd.f32 %v100, %v357
    %359 = vmatmul.f32.gmra.mxu0 %v152
    %v360 = vpop.f32.mrf.mxu0
    %v361 = vadd.f32 %v100, %v360
    %362 = vmatmul.f32.gmra.mxu0 %v155
    %v363 = vpop.f32.mrf.mxu0
    %v364 = vadd.f32 %v100, %v363
    %365 = vmatmul.f32.gmra.mxu0 %v158
    %v366 = vpop.f32.mrf.mxu0
    %v367 = vadd.f32 %v100, %v366
    %368 = vmatmul.f32.gmra.mxu0 %v161
    %v369 = vpop.f32.mrf.mxu0
    %v370 = vadd.f32 %v100, %v369
    %371 = vmatmul.f32.gmra.mxu0 %v164
    %v372 = vpop.f32.mrf.mxu0
    %v373 = vadd.f32 %v100, %v372
    %374 = vmatmul.f32.gmra.mxu0 %v167
    %v375 = vpop.f32.mrf.mxu0
    %v376 = vadd.f32 %v100, %v375
    %377 = vmatmul.f32.gmra.mxu0 %v170
    %v378 = vpop.f32.mrf.mxu0
    %v379 = vadd.f32 %v100, %v378
    %380 = vmatmul.f32.gmra.mxu0 %v173
    %v381 = vpop.f32.mrf.mxu0
    %v382 = vadd.f32 %v100, %v381
    %383 = vmatmul.f32.gmra.mxu0 %v176
    %v384 = vpop.f32.mrf.mxu0
    %v385 = vadd.f32 %v100, %v384
    %386 = vmatmul.f32.gmra.mxu0 %v179
    %v387 = vpop.f32.mrf.mxu0
    %v388 = vadd.f32 %v100, %v387
    %389 = vmatmul.f32.gmra.mxu0 %v182
    %v390 = vpop.f32.mrf.mxu0
    %v391 = vadd.f32 %v100, %v390
    %392 = vmatmul.f32.gmra.mxu0 %v185
    %v393 = vpop.f32.mrf.mxu0
    %v394 = vadd.f32 %v100, %v393
    %395 = vmatmul.f32.gmra.mxu0 %v188
    %v396 = vpop.f32.mrf.mxu0
    %v397 = vadd.f32 %v100, %v396
    %398 = vmatmul.f32.gmra.mxu0 %v191
    %v399 = vpop.f32.mrf.mxu0
    %v400 = vadd.f32 %v100, %v399
    %401 = vmatmul.f32.gmra.mxu0 %v194
    %v402 = vpop.f32.mrf.mxu0
    %v403 = vadd.f32 %v100, %v402
    %404 = vmatmul.f32.gmra.mxu0 %v197
    %v405 = vpop.f32.mrf.mxu0
    %v406 = vadd.f32 %v100, %v405
    %407 = vmatmul.f32.gmra.mxu0 %v200
    %v408 = vpop.f32.mrf.mxu0
    %v409 = vadd.f32 %v100, %v408
    %410 = vmatmul.f32.gmra.mxu0 %v203
    %v411 = vpop.f32.mrf.mxu0
    %v412 = vadd.f32 %v100, %v411
    %413 = vmatmul.f32.gmra.mxu0 %v206
    %v414 = vpop.f32.mrf.mxu0
    %v415 = vadd.f32 %v100, %v414
    %416 = vmatmul.f32.gmra.mxu0 %v209
    %v417 = vpop.f32.mrf.mxu0
    %v418 = vadd.f32 %v100, %v417
    %419 = vmatmul.f32.gmra.mxu0 %v212
    %v420 = vpop.f32.mrf.mxu0
    %v421 = vadd.f32 %v100, %v420
    %422 = vmatmul.f32.gmra.mxu0 %v215
    %v423 = vpop.f32.mrf.mxu0
    %v424 = vadd.f32 %v100, %v423
    %425 = vmatmul.f32.gmra.mxu0 %v218
    %v426 = vpop.f32.mrf.mxu0
    %v427 = vadd.f32 %v100, %v426
    %428 = vmatmul.f32.gmra.mxu0 %v221
    %v429 = vpop.f32.mrf.mxu0
    %v430 = vadd.f32 %v100, %v429
    %431 = vmatmul.f32.gmra.mxu0 %v224
    %v432 = vpop.f32.mrf.mxu0
    %v433 = vadd.f32 %v100, %v432
    %434 = vmatmul.f32.gmra.mxu0 %v227
    %v435 = vpop.f32.mrf.mxu0
    %v436 = vadd.f32 %v100, %v435
    %437 = vmatmul.f32.gmra.mxu0 %v230
    %v438 = vpop.f32.mrf.mxu0
    %v439 = vadd.f32 %v100, %v438
    %440 = vmatmul.f32.gmra.mxu0 %v233
    %v441 = vpop.f32.mrf.mxu0
    %v442 = vadd.f32 %v100, %v441
    %443 = vmatmul.f32.gmra.mxu0 %v236
    %v444 = vpop.f32.mrf.mxu0
    %v445 = vadd.f32 %v100, %v444
    %446 = vmatmul.f32.gmra.mxu0 %v239
    %v447 = vpop.f32.mrf.mxu0
    %v448 = vadd.f32 %v100, %v447
    %449 = vmatmul.f32.gmra.mxu0 %v242
    %v450 = vpop.f32.mrf.mxu0
    %v451 = vadd.f32 %v100, %v450
    %452 = vmatmul.f32.gmra.mxu0 %v245
    %v453 = vpop.f32.mrf.mxu0
    %v454 = vadd.f32 %v100, %v453
    %455 = vmatmul.f32.gmra.mxu0 %v248
    %v456 = vpop.f32.mrf.mxu0
    %v457 = vadd.f32 %v100, %v456
    %458 = vmatmul.f32.gmra.mxu0 %v251
    %v459 = vpop.f32.mrf.mxu0
    %v460 = vadd.f32 %v100, %v459
    %461 = vmatmul.f32.gmra.mxu0 %v254
    %v462 = vpop.f32.mrf.mxu0
    %v463 = vadd.f32 %v100, %v462
    %464 = vmatmul.f32.gmra.mxu0 %v257
    %v465 = vpop.f32.mrf.mxu0
    %v466 = vadd.f32 %v100, %v465
    %467 = vmatmul.f32.gmra.mxu0 %v260
    %v468 = vpop.f32.mrf.mxu0
    %v469 = vadd.f32 %v100, %v468
    %470 = vmatmul.f32.gmra.mxu0 %v263
    %v471 = vpop.f32.mrf.mxu0
    %v472 = vadd.f32 %v100, %v471
    %473 = vmatmul.f32.gmra.mxu0 %v266
    %v474 = vpop.f32.mrf.mxu0
    %v475 = vadd.f32 %v100, %v474
    %476 = vmatmul.f32.gmra.mxu0 %v269
    %v477 = vpop.f32.mrf.mxu0
    %v478 = vadd.f32 %v100, %v477
    %479 = vmatmul.f32.gmra.mxu0 %v272
    %v480 = vpop.f32.mrf.mxu0
    %v481 = vadd.f32 %v100, %v480
    %482 = vmatmul.f32.gmra.mxu0 %v275
    %v483 = vpop.f32.mrf.mxu0
    %v484 = vadd.f32 %v100, %v483
    %485 = vmatmul.f32.gmra.mxu0 %v278
    %v486 = vpop.f32.mrf.mxu0
    %v487 = vadd.f32 %v100, %v486
    %488 = vmatmul.f32.gmra.mxu0 %v281
    %v489 = vpop.f32.mrf.mxu0
    %v490 = vadd.f32 %v100, %v489
    %491 = vmatmul.f32.gmra.mxu0 %v284
    %v492 = vpop.f32.mrf.mxu0
    %v493 = vadd.f32 %v100, %v492
    %494 = vmatmul.f32.gmra.mxu0 %v287
    %v495 = vpop.f32.mrf.mxu0
    %v496 = vadd.f32 %v100, %v495
    %497 = vmatmul.f32.gmra.mxu0 %v290
    %v498 = vpop.f32.mrf.mxu0
    %v499 = vadd.f32 %v100, %v498
    %500 = vmatmul.f32.gmra.mxu0 %v293
    %v501 = vpop.f32.mrf.mxu0
    %v502 = vadd.f32 %v100, %v501
    %503 = vdwg.mxu0
    %vm504 = vcmask 785408
    %505 = vst.msk [vmem:[%s3] sm:$0xff] %vm504, %v313
    %506 = vst.msk [vmem:[%s3 + $0x8] sm:$0xff] %vm504, %v316
    %507 = vst.msk [vmem:[%s3 + $0x10] sm:$0xff] %vm504, %v319
    %508 = vst.msk [vmem:[%s3 + $0x18] sm:$0xff] %vm504, %v322
    %509 = vst.msk [vmem:[%s3 + $0x20] sm:$0xff] %vm504, %v325
    %510 = vst.msk [vmem:[%s3 + $0x28] sm:$0xff] %vm504, %v328
    %511 = vst.msk [vmem:[%s3 + $0x30] sm:$0xff] %vm504, %v331
    %512 = vst.msk [vmem:[%s3 + $0x38] sm:$0xff] %vm504, %v334
    %513 = vst.msk [vmem:[%s3 + $0x40] sm:$0xff] %vm504, %v337
    %514 = vst.msk [vmem:[%s3 + $0x48] sm:$0xff] %vm504, %v340
    %515 = vst.msk [vmem:[%s3 + $0x50] sm:$0xff] %vm504, %v343
    %516 = vst.msk [vmem:[%s3 + $0x58] sm:$0xff] %vm504, %v346
    %517 = vst.msk [vmem:[%s3 + $0x60] sm:$0xff] %vm504, %v349
    %518 = vst.msk [vmem:[%s3 + $0x68] sm:$0xff] %vm504, %v352
    %519 = vst.msk [vmem:[%s3 + $0x70] sm:$0xff] %vm504, %v355
    %520 = vst.msk [vmem:[%s3 + $0x78] sm:$0xff] %vm504, %v358
    %521 = vst.msk [vmem:[%s3 + $0x80] sm:$0xff] %vm504, %v361
    %522 = vst.msk [vmem:[%s3 + $0x88] sm:$0xff] %vm504, %v364
    %523 = vst.msk [vmem:[%s3 + $0x90] sm:$0xff] %vm504, %v367
    %524 = vst.msk [vmem:[%s3 + $0x98] sm:$0xff] %vm504, %v370
    %525 = vst.msk [vmem:[%s3 + $0xa0] sm:$0xff] %vm504, %v373
    %526 = vst.msk [vmem:[%s3 + $0xa8] sm:$0xff] %vm504, %v376
    %527 = vst.msk [vmem:[%s3 + $0xb0] sm:$0xff] %vm504, %v379
    %528 = vst.msk [vmem:[%s3 + $0xb8] sm:$0xff] %vm504, %v382
    %529 = vst.msk [vmem:[%s3 + $0xc0] sm:$0xff] %vm504, %v385
    %530 = vst.msk [vmem:[%s3 + $0xc8] sm:$0xff] %vm504, %v388
    %531 = vst.msk [vmem:[%s3 + $0xd0] sm:$0xff] %vm504, %v391
    %532 = vst.msk [vmem:[%s3 + $0xd8] sm:$0xff] %vm504, %v394
    %533 = vst.msk [vmem:[%s3 + $0xe0] sm:$0xff] %vm504, %v397
    %534 = vst.msk [vmem:[%s3 + $0xe8] sm:$0xff] %vm504, %v400
    %535 = vst.msk [vmem:[%s3 + $0xf0] sm:$0xff] %vm504, %v403
    %536 = vst.msk [vmem:[%s3 + $0xf8] sm:$0xff] %vm504, %v406
    %537 = vst.msk [vmem:[%s3 + $0x100] sm:$0xff] %vm504, %v409
    %538 = vst.msk [vmem:[%s3 + $0x108] sm:$0xff] %vm504, %v412
    %539 = vst.msk [vmem:[%s3 + $0x110] sm:$0xff] %vm504, %v415
    %540 = vst.msk [vmem:[%s3 + $0x118] sm:$0xff] %vm504, %v418
    %541 = vst.msk [vmem:[%s3 + $0x120] sm:$0xff] %vm504, %v421
    %542 = vst.msk [vmem:[%s3 + $0x128] sm:$0xff] %vm504, %v424
    %543 = vst.msk [vmem:[%s3 + $0x130] sm:$0xff] %vm504, %v427
    %544 = vst.msk [vmem:[%s3 + $0x138] sm:$0xff] %vm504, %v430
    %545 = vst.msk [vmem:[%s3 + $0x140] sm:$0xff] %vm504, %v433
    %546 = vst.msk [vmem:[%s3 + $0x148] sm:$0xff] %vm504, %v436
    %547 = vst.msk [vmem:[%s3 + $0x150] sm:$0xff] %vm504, %v439
    %548 = vst.msk [vmem:[%s3 + $0x158] sm:$0xff] %vm504, %v442
    %549 = vst.msk [vmem:[%s3 + $0x160] sm:$0xff] %vm504, %v445
    %550 = vst.msk [vmem:[%s3 + $0x168] sm:$0xff] %vm504, %v448
    %551 = vst.msk [vmem:[%s3 + $0x170] sm:$0xff] %vm504, %v451
    %552 = vst.msk [vmem:[%s3 + $0x178] sm:$0xff] %vm504, %v454
    %553 = vst.msk [vmem:[%s3 + $0x180] sm:$0xff] %vm504, %v457
    %554 = vst.msk [vmem:[%s3 + $0x188] sm:$0xff] %vm504, %v460
    %555 = vst.msk [vmem:[%s3 + $0x190] sm:$0xff] %vm504, %v463
    %556 = vst.msk [vmem:[%s3 + $0x198] sm:$0xff] %vm504, %v466
    %557 = vst.msk [vmem:[%s3 + $0x1a0] sm:$0xff] %vm504, %v469
    %558 = vst.msk [vmem:[%s3 + $0x1a8] sm:$0xff] %vm504, %v472
    %559 = vst.msk [vmem:[%s3 + $0x1b0] sm:$0xff] %vm504, %v475
    %560 = vst.msk [vmem:[%s3 + $0x1b8] sm:$0xff] %vm504, %v478
    %561 = vst.msk [vmem:[%s3 + $0x1c0] sm:$0xff] %vm504, %v481
    %562 = vst.msk [vmem:[%s3 + $0x1c8] sm:$0xff] %vm504, %v484
    %563 = vst.msk [vmem:[%s3 + $0x1d0] sm:$0xff] %vm504, %v487
    %564 = vst.msk [vmem:[%s3 + $0x1d8] sm:$0xff] %vm504, %v490
    %565 = vst.msk [vmem:[%s3 + $0x1e0] sm:$0xff] %vm504, %v493
    %566 = vst.msk [vmem:[%s3 + $0x1e8] sm:$0xff] %vm504, %v496
    %567 = vst.msk [vmem:[%s3 + $0x1f0] sm:$0xff] %vm504, %v499
    %568 = vst.msk [vmem:[%s3 + $0x1f8] sm:$0xff] %vm504, %v502
    // Predicated region
    $region18: #{multihead_attention_vitno.3} parent=1 // pred_check
      _
    $region19: #{multihead_attention_vitno.3} parent=1 // pred_check_branch
      %570 = sbr.rel (0) target = $region21
    $region20: #{multihead_attention_vitno.3} parent=1 // pred_region
      _
    $region21: #{multihead_attention_vitno.3} parent=1 // pred_fallthru
      _
    // Predicated region
    $region22: #{multihead_attention_vitno.3} parent=1 // pred_check
      _
    $region23: #{multihead_attention_vitno.3} parent=1 // pred_check_branch
      %572 = sbr.rel (0) target = $region25
    $region24: #{multihead_attention_vitno.3} parent=1 // pred_region
      _
    $region25: #{multihead_attention_vitno.3} parent=1 // pred_fallthru
      _
    %573 = vsyncpa [#allocation3], 1

// kernel: multihead_attention_vitno.4
$region0: #{multihead_attention_vitno.4}
  #allocation0 [shape = 'u32[]', space=smem, size = 0x4, offset = 0x4, fixed_abs, tag = 'smem constant byte address 0x4 - core index']
  #allocation1 [shape = 'u32[72,128]{1,0:T(1,128)}', space=vmem, size = 0x9000, scoped, tag = 'internal scratch']
  %s0 = inlined_call_operand.vmem [shape: f32[2,4,16,128], index: 0, kind: input, shape index: {}]
  %s1 = inlined_call_operand.vmem [shape: f32[2,4,16,128], index: 1, kind: input, shape index: {}]
  %s2 = inlined_call_operand.vmem [shape: f32[2,4,16,128], index: 2, kind: input, shape index: {}]
  %s3 = inlined_call_operand.vmem [shape: f32[2,4,16,128], index: 3, kind: output, shape index: {}]
  %s4 = sld [smem:[#allocation0]]
  $region45: #{multihead_attention_vitno.4} parent=0
    _
  %s6 = ssub.s32 1, %s4
  %s7 = scalar_select 0, %s6, %s4
  loop: start=0, step=1, limit=4
  $region2: #{multihead_attention_vitno.4} parent=0 // loop_pre_header
    _
  $region3: #{multihead_attention_vitno.4} parent=0 // loop_header
    %s9 = sphi 0, %s13
    %p10 = scmp.ge.s32.totalorder %s9, 4
    %s19 = sphi 0, %s21
    %s22 = sphi 0, %s19
    %s23 = sphi 0, %s22
    %s39 = sphi 0, %s23
    %s45 = sphi 0, %s47
    %s48 = sphi 0, %s45
    %s49 = sphi 0, %s48
    %s65 = sphi 0, %s49
    %s71 = sphi 0, %s73
    %s74 = sphi 0, %s71
    %s75 = sphi 0, %s74
    %s91 = sphi 0, %s75
    %s97 = sphi 0, %s99
    %s100 = sphi 0, %s97
    %s101 = sphi 0, %s100
    %s117 = sphi 0, %s101
  $region4: #{multihead_attention_vitno.4} parent=0 // loop_header_branch
    %12 = sbr.rel (%p10) target = $region8
  $region5: #{multihead_attention_vitno.4} parent=0 // loop_body
    %s14 = ssub.s32 %s9, 1
    %s15 = ssub.s32 %s9, 2
    %s16 = sadd.s32 %s9, 1
    %s17 = ssub.s32 %s9, %s16
    %p18 = scmp.eq.s32.totalorder %s17, 0
    %s20 = sadd.s32 %s19, 1
    %s21 = scalar_select %p18, %s19, %s20
    %p24 = pneg %p18
    %p25 = scmp.eq.s32.totalorder %s9, 1
    %p26 = por %p24, %p25
    %p27 = scmp.ne.s32.totalorder %s19, %s22
    %p28 = scmp.eq.s32.totalorder %s9, 0
    %p29 = por %p27, %p28
    %p30 = scmp.ne.s32.totalorder %s19, %s22
    %p31 = scmp.eq.s32.totalorder %s14, 1
    %p32 = por %p30, %p31
    %p33 = scmp.ne.s32.totalorder %s22, %s23
    %p34 = scmp.eq.s32.totalorder %s14, 0
    %p35 = por %p33, %p34
    %p36 = scmp.ne.s32.totalorder %s22, %s23
    %p37 = scmp.eq.s32.totalorder %s15, 1
    %p38 = por %p36, %p37
    %p40 = scmp.ne.s32.totalorder %s23, %s39
    %p41 = scmp.eq.s32.totalorder %s15, 0
    %p42 = por %p40, %p41
    %s43 = ssub.s32 %s9, %s16
    %p44 = scmp.eq.s32.totalorder %s43, 0
    %s46 = sadd.s32 %s45, 1
    %s47 = scalar_select %p44, %s45, %s46
    %p50 = pneg %p44
    %p51 = scmp.eq.s32.totalorder %s9, 1
    %p52 = por %p50, %p51
    %p53 = scmp.ne.s32.totalorder %s45, %s48
    %p54 = scmp.eq.s32.totalorder %s9, 0
    %p55 = por %p53, %p54
    %p56 = scmp.ne.s32.totalorder %s45, %s48
    %p57 = scmp.eq.s32.totalorder %s14, 1
    %p58 = por %p56, %p57
    %p59 = scmp.ne.s32.totalorder %s48, %s49
    %p60 = scmp.eq.s32.totalorder %s14, 0
    %p61 = por %p59, %p60
    %p62 = scmp.ne.s32.totalorder %s48, %s49
    %p63 = scmp.eq.s32.totalorder %s15, 1
    %p64 = por %p62, %p63
    %p66 = scmp.ne.s32.totalorder %s49, %s65
    %p67 = scmp.eq.s32.totalorder %s15, 0
    %p68 = por %p66, %p67
    %s69 = ssub.s32 %s9, %s16
    %p70 = scmp.eq.s32.totalorder %s69, 0
    %s72 = sadd.s32 %s71, 1
    %s73 = scalar_select %p70, %s71, %s72
    %p76 = pneg %p70
    %p77 = scmp.eq.s32.totalorder %s9, 1
    %p78 = por %p76, %p77
    %p79 = scmp.ne.s32.totalorder %s71, %s74
    %p80 = scmp.eq.s32.totalorder %s9, 0
    %p81 = por %p79, %p80
    %p82 = scmp.ne.s32.totalorder %s71, %s74
    %p83 = scmp.eq.s32.totalorder %s14, 1
    %p84 = por %p82, %p83
    %p85 = scmp.ne.s32.totalorder %s74, %s75
    %p86 = scmp.eq.s32.totalorder %s14, 0
    %p87 = por %p85, %p86
    %p88 = scmp.ne.s32.totalorder %s74, %s75
    %p89 = scmp.eq.s32.totalorder %s15, 1
    %p90 = por %p88, %p89
    %p92 = scmp.ne.s32.totalorder %s75, %s91
    %p93 = scmp.eq.s32.totalorder %s15, 0
    %p94 = por %p92, %p93
    %s95 = ssub.s32 %s9, %s16
    %p96 = scmp.eq.s32.totalorder %s95, 0
    %s98 = sadd.s32 %s97, 1
    %s99 = scalar_select %p96, %s97, %s98
    %p102 = pneg %p96
    %p103 = scmp.eq.s32.totalorder %s9, 1
    %p104 = por %p102, %p103
    %p105 = scmp.ne.s32.totalorder %s97, %s100
    %p106 = scmp.eq.s32.totalorder %s9, 0
    %p107 = por %p105, %p106
    %p108 = scmp.ne.s32.totalorder %s97, %s100
    %p109 = scmp.eq.s32.totalorder %s14, 1
    %p110 = por %p108, %p109
    %p111 = scmp.ne.s32.totalorder %s100, %s101
    %p112 = scmp.eq.s32.totalorder %s14, 0
    %p113 = por %p111, %p112
    %p114 = scmp.ne.s32.totalorder %s100, %s101
    %p115 = scmp.eq.s32.totalorder %s15, 1
    %p116 = por %p114, %p115
    %p118 = scmp.ne.s32.totalorder %s101, %s117
    %p119 = scmp.eq.s32.totalorder %s15, 0
    %p120 = por %p118, %p119
    %p121 = scmp.le.s32.totalorder 1, %s9
    %p122 = scmp.lt.s32.totalorder %s9, 3
    %p123 = pnand %p121, %p122
    %p124 = pneg %p123
    // Predicated region
    $region9: #{multihead_attention_vitno.4} parent=5 // pred_check
      _
    $region10: #{multihead_attention_vitno.4} parent=5 // pred_check_branch
      %126 = sbr.rel (%p123) target = $region12
    $region11: #{multihead_attention_vitno.4} parent=5 // pred_region
      %s127 = ssub.s32 %s9, 1
    $region12: #{multihead_attention_vitno.4} parent=5 // pred_fallthru
      _
    %p128 = scmp.lt.s32.totalorder %s9, 2
    // Predicated region
    $region13: #{multihead_attention_vitno.4} parent=5 // pred_check
      %p129 = pneg %p128
    $region14: #{multihead_attention_vitno.4} parent=5 // pred_check_branch
      %131 = sbr.rel (%p129) target = $region16
    $region15: #{multihead_attention_vitno.4} parent=5 // pred_region
      // Predicated region
      $region17: #{multihead_attention_vitno.4} parent=15 // pred_check
        %p132 = pneg %p29
      $region18: #{multihead_attention_vitno.4} parent=15 // pred_check_branch
        %134 = sbr.rel (%p132) target = $region20
      $region19: #{multihead_attention_vitno.4} parent=15 // pred_region
        %p135 = scmp.lt.s32.totalorder %s9, 1
        %s136 = scalar_select %p135, %s9, 1
        %s137 = smul.addr %s136, 8
        %s138 = smul.addr %s137, 8
        %s139 = scalar_lea.vmem %s0, %s138
      $region20: #{multihead_attention_vitno.4} parent=15 // pred_fallthru
        _
      // Predicated region
      $region21: #{multihead_attention_vitno.4} parent=15 // pred_check
        %p140 = pneg %p55
      $region22: #{multihead_attention_vitno.4} parent=15 // pred_check_branch
        %142 = sbr.rel (%p140) target = $region24
      $region23: #{multihead_attention_vitno.4} parent=15 // pred_region
        %p143 = scmp.lt.s32.totalorder %s9, 1
        %s144 = scalar_select %p143, %s9, 1
        %s145 = smul.addr %s144, 8
        %s146 = smul.addr %s145, 8
        %s147 = scalar_lea.vmem %s1, %s146
      $region24: #{multihead_attention_vitno.4} parent=15 // pred_fallthru
        _
      // Predicated region
      $region25: #{multihead_attention_vitno.4} parent=15 // pred_check
        %p148 = pneg %p81
      $region26: #{multihead_attention_vitno.4} parent=15 // pred_check_branch
        %150 = sbr.rel (%p148) target = $region28
      $region27: #{multihead_attention_vitno.4} parent=15 // pred_region
        %p151 = scmp.lt.s32.totalorder %s9, 1
        %s152 = scalar_select %p151, %s9, 1
        %s153 = smul.addr %s152, 8
        %s154 = smul.addr %s153, 8
        %s155 = scalar_lea.vmem %s2, %s154
      $region28: #{multihead_attention_vitno.4} parent=15 // pred_fallthru
        _
    $region16: #{multihead_attention_vitno.4} parent=5 // pred_fallthru
      _
    %p156 = scmp.le.s32.totalorder 1, %s9
    %p157 = scmp.lt.s32.totalorder %s9, 3
    %p158 = pnand %p156, %p157
    %p159 = pneg %p158
    // Predicated region
    $region29: #{multihead_attention_vitno.4} parent=5 // pred_check
      _
    $region30: #{multihead_attention_vitno.4} parent=5 // pred_check_branch
      %161 = sbr.rel (%p158) target = $region32
    $region31: #{multihead_attention_vitno.4} parent=5 // pred_region
      %s162 = ssub.s32 %s9, 1
      %p163 = scmp.lt.s32.totalorder %s14, 1
      %s164 = scalar_select %p163, %s14, 1
      %s165 = smul.addr %s164, 8
      %s166 = smul.addr %s165, 8
      %s167 = scalar_lea.vmem %s0, %s166
      %p168 = pneg %p35
      %p169 = pneg %p32
      %p170 = scmp.lt.s32.totalorder %s14, 1
      %s171 = scalar_select %p170, %s14, 1
      %s172 = smul.addr %s171, 8
      %s173 = smul.addr %s172, 8
      %s174 = scalar_lea.vmem %s1, %s173
      %p175 = pneg %p61
      %p176 = pneg %p58
      %p177 = scmp.lt.s32.totalorder %s14, 1
      %s178 = scalar_select %p177, %s14, 1
      %s179 = smul.addr %s178, 8
      %s180 = smul.addr %s179, 8
      %s181 = scalar_lea.vmem %s2, %s180
      %p182 = pneg %p87
      %p183 = pneg %p84
      %p184 = pneg %p113
      %p185 = pneg %p110
      %p186 = scmp.lt.s32.totalorder %s14, 1
      %s187 = scalar_select %p186, %s14, 1
      %s188 = smul.addr %s187, 8
      %s189 = smul.addr %s188, 8
      %s190 = scalar_lea.vmem %s3, %s189
      %p191 = scmp.lt.s32.totalorder %s14, 1
      %s192 = scalar_select %p191, %s14, 1
      %s193 = smul.addr %s192, 8
      %s194 = smul.addr %s193, 8
      %s195 = scalar_lea.vmem %s0, %s194
      %p196 = scmp.lt.s32.totalorder %s14, 1
      %s197 = scalar_select %p196, %s14, 1
      %s198 = smul.addr %s197, 8
      %s199 = smul.addr %s198, 8
      %s200 = scalar_lea.vmem %s1, %s199
      %p201 = scmp.lt.s32.totalorder %s14, 1
      %s202 = scalar_select %p201, %s14, 1
      %s203 = smul.addr %s202, 8
      %s204 = smul.addr %s203, 8
      %s205 = scalar_lea.vmem %s2, %s204
      %p206 = scmp.lt.s32.totalorder %s14, 1
      %s207 = scalar_select %p206, %s14, 1
      %s208 = smul.addr %s207, 8
      %s209 = smul.addr %s208, 8
      %s210 = scalar_lea.vmem %s3, %s209
      %v211 = vld [vmem:[%s195] sm:$0xff]
      %v212 = vld [vmem:[%s195 + $0x8] sm:$0xff]
      %v213 = vld [vmem:[%s195 + $0x10] sm:$0xff]
      %v214 = vld [vmem:[%s195 + $0x18] sm:$0xff]
      %v215 = vld [vmem:[%s195 + $0x20] sm:$0xff]
      %v216 = vld [vmem:[%s195 + $0x28] sm:$0xff]
      %v217 = vld [vmem:[%s195 + $0x30] sm:$0xff]
      %v218 = vld [vmem:[%s195 + $0x38] sm:$0xff]
      %v219 = vld [vmem:[%s200] sm:$0xff]
      %v220 = vld [vmem:[%s200 + $0x8] sm:$0xff]
      %v221 = vld [vmem:[%s200 + $0x10] sm:$0xff]
      %v222 = vld [vmem:[%s200 + $0x18] sm:$0xff]
      %v223 = vld [vmem:[%s200 + $0x20] sm:$0xff]
      %v224 = vld [vmem:[%s200 + $0x28] sm:$0xff]
      %v225 = vld [vmem:[%s200 + $0x30] sm:$0xff]
      %v226 = vld [vmem:[%s200 + $0x38] sm:$0xff]
      %v227 = vld [vmem:[%s205] sm:$0xff]
      %v228 = vld [vmem:[%s205 + $0x8] sm:$0xff]
      %v229 = vld [vmem:[%s205 + $0x10] sm:$0xff]
      %v230 = vld [vmem:[%s205 + $0x18] sm:$0xff]
      %v231 = vld [vmem:[%s205 + $0x20] sm:$0xff]
      %v232 = vld [vmem:[%s205 + $0x28] sm:$0xff]
      %v233 = vld [vmem:[%s205 + $0x30] sm:$0xff]
      %v234 = vld [vmem:[%s205 + $0x38] sm:$0xff]
      %235 = vmatpush.xpose.msra.mxu0 0.0
      %236 = vmatpush.xpose.msra.mxu0 0.0
      %237 = vmatpush.xpose.msra.mxu0 0.0
      %238 = vmatpush.xpose.msra.mxu0 0.0
      %239 = vmatpush.xpose.msra.mxu0 0.0
      %240 = vmatpush.xpose.msra.mxu0 0.0
      %241 = vmatpush.xpose.msra.mxu0 0.0
      %242 = vmatpush.xpose.msra.mxu0 0.0
      %243 = vmatpush.xpose.msra.mxu0 0.0
      %244 = vmatpush.xpose.msra.mxu0 0.0
      %245 = vmatpush.xpose.msra.mxu0 0.0
      %246 = vmatpush.xpose.msra.mxu0 0.0
      %247 = vmatpush.xpose.msra.mxu0 0.0
      %248 = vmatpush.xpose.msra.mxu0 0.0
      %249 = vmatpush.xpose.msra.mxu0 %v220
      %250 = vmatpush.xpose.msra.mxu0 %v219
      %251 = vmatmul.f32.gmra.mxu0 %v211
      %v252 = vpop.f32.mrf.mxu0
      %v253 = vadd.f32 0.0, %v252
      %254 = vmatmul.f32.gmra.mxu0 %v212
      %v255 = vpop.f32.mrf.mxu0
      %v256 = vadd.f32 0.0, %v255
      %257 = vdwg.mxu0
      %258 = vmatpush.xpose.msra.mxu0 0.0
      %259 = vmatpush.xpose.msra.mxu0 0.0
      %260 = vmatpush.xpose.msra.mxu0 0.0
      %261 = vmatpush.xpose.msra.mxu0 0.0
      %262 = vmatpush.xpose.msra.mxu0 0.0
      %263 = vmatpush.xpose.msra.mxu0 0.0
      %264 = vmatpush.xpose.msra.mxu0 0.0
      %265 = vmatpush.xpose.msra.mxu0 0.0
      %266 = vmatpush.xpose.msra.mxu0 0.0
      %267 = vmatpush.xpose.msra.mxu0 0.0
      %268 = vmatpush.xpose.msra.mxu0 0.0
      %269 = vmatpush.xpose.msra.mxu0 0.0
      %270 = vmatpush.xpose.msra.mxu0 0.0
      %271 = vmatpush.xpose.msra.mxu0 0.0
      %272 = vmatpush.xpose.msra.mxu0 %v222
      %273 = vmatpush.xpose.msra.mxu0 %v221
      %274 = vmatmul.f32.gmra.mxu0 %v213
      %v275 = vpop.f32.mrf.mxu0
      %v276 = vadd.f32 0.0, %v275
      %277 = vmatmul.f32.gmra.mxu0 %v214
      %v278 = vpop.f32.mrf.mxu0
      %v279 = vadd.f32 0.0, %v278
      %280 = vdwg.mxu0
      %281 = vmatpush.xpose.msra.mxu0 0.0
      %282 = vmatpush.xpose.msra.mxu0 0.0
      %283 = vmatpush.xpose.msra.mxu0 0.0
      %284 = vmatpush.xpose.msra.mxu0 0.0
      %285 = vmatpush.xpose.msra.mxu0 0.0
      %286 = vmatpush.xpose.msra.mxu0 0.0
      %287 = vmatpush.xpose.msra.mxu0 0.0
      %288 = vmatpush.xpose.msra.mxu0 0.0
      %289 = vmatpush.xpose.msra.mxu0 0.0
      %290 = vmatpush.xpose.msra.mxu0 0.0
      %291 = vmatpush.xpose.msra.mxu0 0.0
      %292 = vmatpush.xpose.msra.mxu0 0.0
      %293 = vmatpush.xpose.msra.mxu0 0.0
      %294 = vmatpush.xpose.msra.mxu0 0.0
      %295 = vmatpush.xpose.msra.mxu0 %v224
      %296 = vmatpush.xpose.msra.mxu0 %v223
      %297 = vmatmul.f32.gmra.mxu0 %v215
      %v298 = vpop.f32.mrf.mxu0
      %v299 = vadd.f32 0.0, %v298
      %300 = vmatmul.f32.gmra.mxu0 %v216
      %v301 = vpop.f32.mrf.mxu0
      %v302 = vadd.f32 0.0, %v301
      %303 = vdwg.mxu0
      %304 = vmatpush.xpose.msra.mxu0 0.0
      %305 = vmatpush.xpose.msra.mxu0 0.0
      %306 = vmatpush.xpose.msra.mxu0 0.0
      %307 = vmatpush.xpose.msra.mxu0 0.0
      %308 = vmatpush.xpose.msra.mxu0 0.0
      %309 = vmatpush.xpose.msra.mxu0 0.0
      %310 = vmatpush.xpose.msra.mxu0 0.0
      %311 = vmatpush.xpose.msra.mxu0 0.0
      %312 = vmatpush.xpose.msra.mxu0 0.0
      %313 = vmatpush.xpose.msra.mxu0 0.0
      %314 = vmatpush.xpose.msra.mxu0 0.0
      %315 = vmatpush.xpose.msra.mxu0 0.0
      %316 = vmatpush.xpose.msra.mxu0 0.0
      %317 = vmatpush.xpose.msra.mxu0 0.0
      %318 = vmatpush.xpose.msra.mxu0 %v226
      %319 = vmatpush.xpose.msra.mxu0 %v225
      %320 = vmatmul.f32.gmra.mxu0 %v217
      %v321 = vpop.f32.mrf.mxu0
      %v322 = vadd.f32 0.0, %v321
      %323 = vmatmul.f32.gmra.mxu0 %v218
      %v324 = vpop.f32.mrf.mxu0
      %v325 = vadd.f32 0.0, %v324
      %326 = vdwg.mxu0
      %vm327 = vcmask 130048
      %v328 = vsel %vm327, %v253, -inf
      %329 = vmax.xlane.f32.xlu0 %v328
      %v330 = vpop.xlane.xlu0 %329
      %v331 = vsel %vm327, %v256, -inf
      %332 = vmax.xlane.f32.xlu0 %v331
      %v333 = vpop.xlane.xlu0 %332
      %v334 = vsel %vm327, %v276, -inf
      %335 = vmax.xlane.f32.xlu0 %v334
      %v336 = vpop.xlane.xlu0 %335
      %v337 = vsel %vm327, %v279, -inf
      %338 = vmax.xlane.f32.xlu0 %v337
      %v339 = vpop.xlane.xlu0 %338
      %v340 = vsel %vm327, %v299, -inf
      %341 = vmax.xlane.f32.xlu0 %v340
      %v342 = vpop.xlane.xlu0 %341
      %v343 = vsel %vm327, %v302, -inf
      %344 = vmax.xlane.f32.xlu0 %v343
      %v345 = vpop.xlane.xlu0 %344
      %v346 = vsel %vm327, %v322, -inf
      %347 = vmax.xlane.f32.xlu0 %v346
      %v348 = vpop.xlane.xlu0 %347
      %v349 = vsel %vm327, %v325, -inf
      %350 = vmax.xlane.f32.xlu0 %v349
      %v351 = vpop.xlane.xlu0 %350
      %v352 = vsub.f32 %v253, %v330
      %v353 = vsub.f32 %v256, %v333
      %v354 = vsub.f32 %v276, %v336
      %v355 = vsub.f32 %v279, %v339
      %v356 = vsub.f32 %v299, %v342
      %v357 = vsub.f32 %v302, %v345
      %v358 = vsub.f32 %v322, %v348
      %v359 = vsub.f32 %v325, %v351
      %v360 = vmul.f32 %v352, 1.442695
      %v361 = vpow.pop %v360
      %v362 = vmul.f32 %v353, 1.442695
      %v363 = vpow.pop %v362
      %v364 = vmul.f32 %v354, 1.442695
      %v365 = vpow.pop %v364
      %v366 = vmul.f32 %v355, 1.442695
      %v367 = vpow.pop %v366
      %v368 = vmul.f32 %v356, 1.442695
      %v369 = vpow.pop %v368
      %v370 = vmul.f32 %v357, 1.442695
      %v371 = vpow.pop %v370
      %v372 = vmul.f32 %v358, 1.442695
      %v373 = vpow.pop %v372
      %v374 = vmul.f32 %v359, 1.442695
      %v375 = vpow.pop %v374
      %v376 = vsel %vm327, %v361, 0.0
      %377 = vadd.xlane.f32.xlu0 %v376
      %v378 = vpop.xlane.xlu0 %377
      %v379 = vsel %vm327, %v363, 0.0
      %380 = vadd.xlane.f32.xlu0 %v379
      %v381 = vpop.xlane.xlu0 %380
      %v382 = vsel %vm327, %v365, 0.0
      %383 = vadd.xlane.f32.xlu0 %v382
      %v384 = vpop.xlane.xlu0 %383
      %v385 = vsel %vm327, %v367, 0.0
      %386 = vadd.xlane.f32.xlu0 %v385
      %v387 = vpop.xlane.xlu0 %386
      %v388 = vsel %vm327, %v369, 0.0
      %389 = vadd.xlane.f32.xlu0 %v388
      %v390 = vpop.xlane.xlu0 %389
      %v391 = vsel %vm327, %v371, 0.0
      %392 = vadd.xlane.f32.xlu0 %v391
      %v393 = vpop.xlane.xlu0 %392
      %v394 = vsel %vm327, %v373, 0.0
      %395 = vadd.xlane.f32.xlu0 %v394
      %v396 = vpop.xlane.xlu0 %395
      %v397 = vsel %vm327, %v375, 0.0
      %398 = vadd.xlane.f32.xlu0 %v397
      %v399 = vpop.xlane.xlu0 %398
      %v401 = vsel %vm327, %v361, 0
      %v404 = vsel %vm327, %v363, 0
      %406 = vmatpush.msra.mxu0 0.0
      %407 = vmatpush.msra.mxu0 0.0
      %408 = vmatpush.msra.mxu0 0.0
      %409 = vmatpush.msra.mxu0 0.0
      %410 = vmatpush.msra.mxu0 0.0
      %411 = vmatpush.msra.mxu0 0.0
      %412 = vmatpush.msra.mxu0 0.0
      %413 = vmatpush.msra.mxu0 0.0
      %414 = vmatpush.msra.mxu0 0.0
      %415 = vmatpush.msra.mxu0 0.0
      %416 = vmatpush.msra.mxu0 0.0
      %417 = vmatpush.msra.mxu0 0.0
      %418 = vmatpush.msra.mxu0 0.0
      %419 = vmatpush.msra.mxu0 0.0
      %420 = vmatpush.msra.mxu0 %v228
      %421 = vmatpush.msra.mxu0 %v227
      %422 = vmatmul.f32.gmra.mxu0 %v401
      %v423 = vpop.f32.mrf.mxu0
      %v424 = vadd.f32 0.0, %v423
      %425 = vmatmul.f32.gmra.mxu0 %v404
      %v426 = vpop.f32.mrf.mxu0
      %v427 = vadd.f32 0.0, %v426
      %428 = vdwg.mxu0
      %v430 = vsel %vm327, %v365, 0
      %v433 = vsel %vm327, %v367, 0
      %435 = vmatpush.msra.mxu0 0.0
      %436 = vmatpush.msra.mxu0 0.0
      %437 = vmatpush.msra.mxu0 0.0
      %438 = vmatpush.msra.mxu0 0.0
      %439 = vmatpush.msra.mxu0 0.0
      %440 = vmatpush.msra.mxu0 0.0
      %441 = vmatpush.msra.mxu0 0.0
      %442 = vmatpush.msra.mxu0 0.0
      %443 = vmatpush.msra.mxu0 0.0
      %444 = vmatpush.msra.mxu0 0.0
      %445 = vmatpush.msra.mxu0 0.0
      %446 = vmatpush.msra.mxu0 0.0
      %447 = vmatpush.msra.mxu0 0.0
      %448 = vmatpush.msra.mxu0 0.0
      %449 = vmatpush.msra.mxu0 %v230
      %450 = vmatpush.msra.mxu0 %v229
      %451 = vmatmul.f32.gmra.mxu0 %v430
      %v452 = vpop.f32.mrf.mxu0
      %v453 = vadd.f32 0.0, %v452
      %454 = vmatmul.f32.gmra.mxu0 %v433
      %v455 = vpop.f32.mrf.mxu0
      %v456 = vadd.f32 0.0, %v455
      %457 = vdwg.mxu0
      %v459 = vsel %vm327, %v369, 0
      %v462 = vsel %vm327, %v371, 0
      %464 = vmatpush.msra.mxu0 0.0
      %465 = vmatpush.msra.mxu0 0.0
      %466 = vmatpush.msra.mxu0 0.0
      %467 = vmatpush.msra.mxu0 0.0
      %468 = vmatpush.msra.mxu0 0.0
      %469 = vmatpush.msra.mxu0 0.0
      %470 = vmatpush.msra.mxu0 0.0
      %471 = vmatpush.msra.mxu0 0.0
      %472 = vmatpush.msra.mxu0 0.0
      %473 = vmatpush.msra.mxu0 0.0
      %474 = vmatpush.msra.mxu0 0.0
      %475 = vmatpush.msra.mxu0 0.0
      %476 = vmatpush.msra.mxu0 0.0
      %477 = vmatpush.msra.mxu0 0.0
      %478 = vmatpush.msra.mxu0 %v232
      %479 = vmatpush.msra.mxu0 %v231
      %480 = vmatmul.f32.gmra.mxu0 %v459
      %v481 = vpop.f32.mrf.mxu0
      %v482 = vadd.f32 0.0, %v481
      %483 = vmatmul.f32.gmra.mxu0 %v462
      %v484 = vpop.f32.mrf.mxu0
      %v485 = vadd.f32 0.0, %v484
      %486 = vdwg.mxu0
      %v488 = vsel %vm327, %v373, 0
      %v491 = vsel %vm327, %v375, 0
      %493 = vmatpush.msra.mxu0 0.0
      %494 = vmatpush.msra.mxu0 0.0
      %495 = vmatpush.msra.mxu0 0.0
      %496 = vmatpush.msra.mxu0 0.0
      %497 = vmatpush.msra.mxu0 0.0
      %498 = vmatpush.msra.mxu0 0.0
      %499 = vmatpush.msra.mxu0 0.0
      %500 = vmatpush.msra.mxu0 0.0
      %501 = vmatpush.msra.mxu0 0.0
      %502 = vmatpush.msra.mxu0 0.0
      %503 = vmatpush.msra.mxu0 0.0
      %504 = vmatpush.msra.mxu0 0.0
      %505 = vmatpush.msra.mxu0 0.0
      %506 = vmatpush.msra.mxu0 0.0
      %507 = vmatpush.msra.mxu0 %v234
      %508 = vmatpush.msra.mxu0 %v233
      %509 = vmatmul.f32.gmra.mxu0 %v488
      %v510 = vpop.f32.mrf.mxu0
      %v511 = vadd.f32 0.0, %v510
      %512 = vmatmul.f32.gmra.mxu0 %v491
      %v513 = vpop.f32.mrf.mxu0
      %v514 = vadd.f32 0.0, %v513
      %515 = vdwg.mxu0
      %v516 = vrcp.pop %v378
      %v517 = vmul.f32 %v378, %v516
      %v518 = vsub.f32 1.0, %v517
      %v519 = vmul.f32 %v516, %v518
      %v520 = vadd.f32 %v516, %v519
      %vm521 = vweird.f32 %v378
      %vm522 = vweird.f32 %v516
      %vm523 = vmor %vm521, %vm522
      %v524 = vsel %vm523, %v516, %v520
      %v525 = vand.u32 2147483647, %v378
      %vm526 = vcmp.eq.f32.partialorder %v525, 8.507059e+37
      %v527 = vand.u32 %v378, 2147483648
      %v528 = vor.u32 1.1754944e-38, %v527
      %v529 = vsel %vm526, %v528, %v524
      %v530 = vmul.f32 1.0, %v529
      %v531 = vrcp.pop %v381
      %v532 = vmul.f32 %v381, %v531
      %v533 = vsub.f32 1.0, %v532
      %v534 = vmul.f32 %v531, %v533
      %v535 = vadd.f32 %v531, %v534
      %vm536 = vweird.f32 %v381
      %vm537 = vweird.f32 %v531
      %vm538 = vmor %vm536, %vm537
      %v539 = vsel %vm538, %v531, %v535
      %v540 = vand.u32 2147483647, %v381
      %vm541 = vcmp.eq.f32.partialorder %v540, 8.507059e+37
      %v542 = vand.u32 %v381, 2147483648
      %v543 = vor.u32 1.1754944e-38, %v542
      %v544 = vsel %vm541, %v543, %v539
      %v545 = vmul.f32 1.0, %v544
      %v546 = vrcp.pop %v384
      %v547 = vmul.f32 %v384, %v546
      %v548 = vsub.f32 1.0, %v547
      %v549 = vmul.f32 %v546, %v548
      %v550 = vadd.f32 %v546, %v549
      %vm551 = vweird.f32 %v384
      %vm552 = vweird.f32 %v546
      %vm553 = vmor %vm551, %vm552
      %v554 = vsel %vm553, %v546, %v550
      %v555 = vand.u32 2147483647, %v384
      %vm556 = vcmp.eq.f32.partialorder %v555, 8.507059e+37
      %v557 = vand.u32 %v384, 2147483648
      %v558 = vor.u32 1.1754944e-38, %v557
      %v559 = vsel %vm556, %v558, %v554
      %v560 = vmul.f32 1.0, %v559
      %v561 = vrcp.pop %v387
      %v562 = vmul.f32 %v387, %v561
      %v563 = vsub.f32 1.0, %v562
      %v564 = vmul.f32 %v561, %v563
      %v565 = vadd.f32 %v561, %v564
      %vm566 = vweird.f32 %v387
      %vm567 = vweird.f32 %v561
      %vm568 = vmor %vm566, %vm567
      %v569 = vsel %vm568, %v561, %v565
      %v570 = vand.u32 2147483647, %v387
      %vm571 = vcmp.eq.f32.partialorder %v570, 8.507059e+37
      %v572 = vand.u32 %v387, 2147483648
      %v573 = vor.u32 1.1754944e-38, %v572
      %v574 = vsel %vm571, %v573, %v569
      %v575 = vmul.f32 1.0, %v574
      %v576 = vrcp.pop %v390
      %v577 = vmul.f32 %v390, %v576
      %v578 = vsub.f32 1.0, %v577
      %v579 = vmul.f32 %v576, %v578
      %v580 = vadd.f32 %v576, %v579
      %vm581 = vweird.f32 %v390
      %vm582 = vweird.f32 %v576
      %vm583 = vmor %vm581, %vm582
      %v584 = vsel %vm583, %v576, %v580
      %v585 = vand.u32 2147483647, %v390
      %vm586 = vcmp.eq.f32.partialorder %v585, 8.507059e+37
      %v587 = vand.u32 %v390, 2147483648
      %v588 = vor.u32 1.1754944e-38, %v587
      %v589 = vsel %vm586, %v588, %v584
      %v590 = vmul.f32 1.0, %v589
      %v591 = vrcp.pop %v393
      %v592 = vmul.f32 %v393, %v591
      %v593 = vsub.f32 1.0, %v592
      %v594 = vmul.f32 %v591, %v593
      %v595 = vadd.f32 %v591, %v594
      %vm596 = vweird.f32 %v393
      %vm597 = vweird.f32 %v591
      %vm598 = vmor %vm596, %vm597
      %v599 = vsel %vm598, %v591, %v595
      %v600 = vand.u32 2147483647, %v393
      %vm601 = vcmp.eq.f32.partialorder %v600, 8.507059e+37
      %v602 = vand.u32 %v393, 2147483648
      %v603 = vor.u32 1.1754944e-38, %v602
      %v604 = vsel %vm601, %v603, %v599
      %v605 = vmul.f32 1.0, %v604
      %v606 = vrcp.pop %v396
      %v607 = vmul.f32 %v396, %v606
      %v608 = vsub.f32 1.0, %v607
      %v609 = vmul.f32 %v606, %v608
      %v610 = vadd.f32 %v606, %v609
      %vm611 = vweird.f32 %v396
      %vm612 = vweird.f32 %v606
      %vm613 = vmor %vm611, %vm612
      %v614 = vsel %vm613, %v606, %v610
      %v615 = vand.u32 2147483647, %v396
      %vm616 = vcmp.eq.f32.partialorder %v615, 8.507059e+37
      %v617 = vand.u32 %v396, 2147483648
      %v618 = vor.u32 1.1754944e-38, %v617
      %v619 = vsel %vm616, %v618, %v614
      %v620 = vmul.f32 1.0, %v619
      %v621 = vrcp.pop %v399
      %v622 = vmul.f32 %v399, %v621
      %v623 = vsub.f32 1.0, %v622
      %v624 = vmul.f32 %v621, %v623
      %v625 = vadd.f32 %v621, %v624
      %vm626 = vweird.f32 %v399
      %vm627 = vweird.f32 %v621
      %vm628 = vmor %vm626, %vm627
      %v629 = vsel %vm628, %v621, %v625
      %v630 = vand.u32 2147483647, %v399
      %vm631 = vcmp.eq.f32.partialorder %v630, 8.507059e+37
      %v632 = vand.u32 %v399, 2147483648
      %v633 = vor.u32 1.1754944e-38, %v632
      %v634 = vsel %vm631, %v633, %v629
      %v635 = vmul.f32 1.0, %v634
      %v636 = vmul.f32 %v424, %v530
      %v637 = vmul.f32 %v427, %v545
      %v638 = vmul.f32 %v453, %v560
      %v639 = vmul.f32 %v456, %v575
      %v640 = vmul.f32 %v482, %v590
      %v641 = vmul.f32 %v485, %v605
      %v642 = vmul.f32 %v511, %v620
      %v643 = vmul.f32 %v514, %v635
      %644 = vst [vmem:[%s210] sm:$0xff] %v636
      %645 = vst [vmem:[%s210 + $0x8] sm:$0xff] %v637
      %646 = vst [vmem:[%s210 + $0x10] sm:$0xff] %v638
      %647 = vst [vmem:[%s210 + $0x18] sm:$0xff] %v639
      %648 = vst [vmem:[%s210 + $0x20] sm:$0xff] %v640
      %649 = vst [vmem:[%s210 + $0x28] sm:$0xff] %v641
      %650 = vst [vmem:[%s210 + $0x30] sm:$0xff] %v642
      %651 = vst [vmem:[%s210 + $0x38] sm:$0xff] %v643
      %p652 = scmp.lt.s32.totalorder %s14, 1
      %s653 = scalar_select %p652, %s14, 1
      %s654 = smul.addr %s653, 8
      %s655 = smul.addr %s654, 8
      %s656 = scalar_lea.vmem %s3, %s655
      // Predicated region
      $region33: #{multihead_attention_vitno.4} parent=31 // pred_check
        %p657 = pneg %p110
      $region34: #{multihead_attention_vitno.4} parent=31 // pred_check_branch
        %659 = sbr.rel (%p657) target = $region36
      $region35: #{multihead_attention_vitno.4} parent=31 // pred_region
        _
      $region36: #{multihead_attention_vitno.4} parent=31 // pred_fallthru
        _
    $region32: #{multihead_attention_vitno.4} parent=5 // pred_fallthru
      _
    %p660 = scmp.le.s32.totalorder 2, %s9
    // Predicated region
    $region37: #{multihead_attention_vitno.4} parent=5 // pred_check
      %p661 = pneg %p660
    $region38: #{multihead_attention_vitno.4} parent=5 // pred_check_branch
      %663 = sbr.rel (%p661) target = $region40
    $region39: #{multihead_attention_vitno.4} parent=5 // pred_region
      %s664 = ssub.s32 %s9, 2
      // Predicated region
      $region41: #{multihead_attention_vitno.4} parent=39 // pred_check
        %p665 = pneg %p116
      $region42: #{multihead_attention_vitno.4} parent=39 // pred_check_branch
        %667 = sbr.rel (%p665) target = $region44
      $region43: #{multihead_attention_vitno.4} parent=39 // pred_region
        %p668 = scmp.lt.s32.totalorder %s15, 1
        %s669 = scalar_select %p668, %s15, 1
        %s670 = smul.addr %s669, 8
        %s671 = smul.addr %s670, 8
        %s672 = scalar_lea.vmem %s3, %s671
      $region44: #{multihead_attention_vitno.4} parent=39 // pred_fallthru
        _
    $region40: #{multihead_attention_vitno.4} parent=5 // pred_fallthru
      _
  $region6: #{multihead_attention_vitno.4} parent=0 // loop_footer
    %s13 = sadd.s32 1, %s9
  $region7: #{multihead_attention_vitno.4} parent=0 // loop_footer_branch
    %8 = sbr.rel target = $region3
  $region8: #{multihead_attention_vitno.4} parent=0 // loop_exit
    _

// kernel: multihead_attention_vitno.5
$region0: #{multihead_attention_vitno.5}
  #allocation0 [shape = 'u32[]', space=smem, size = 0x4, offset = 0x4, fixed_abs, tag = 'smem constant byte address 0x4 - core index']
  #allocation1 [shape = 'u32[72,128]{1,0:T(1,128)}', space=vmem, size = 0x9000, scoped, tag = 'internal scratch']
  %s0 = inlined_call_operand.vmem [shape: f32[512,32], index: 0, kind: input, shape index: {}]
  %s1 = inlined_call_operand.vmem [shape: f32[32,32], index: 1, kind: input, shape index: {}]
  %s2 = inlined_call_operand.vmem [shape: f32[1,32], index: 2, kind: input, shape index: {}]
  %s3 = inlined_call_operand.hbm [shape: f32[512,32], index: 3, kind: output, shape index: {}]
  %s4 = sld [smem:[#allocation0]]
  $region22: #{multihead_attention_vitno.5} parent=0
    _
  %s6 = ssub.s32 1, %s4
  %s7 = scalar_select 0, %s6, %s4
  $region1: #{multihead_attention_vitno.5} parent=0
    #allocation2 [shape = 'u8[262144]{0}', space=vmem, size = 0x40000, scoped, tag = 'output window, operand 0, single buffered']
    #allocation3 [shape = 's32[1]{0}', space=sflag, size = 0x4, scoped, tag = 'scoped memory for multihead_attention_vitno.5']
    %8 = vsyncpa [#allocation3], 0
    // Predicated region
    $region2: #{multihead_attention_vitno.5} parent=1 // pred_check
      _
    $region3: #{multihead_attention_vitno.5} parent=1 // pred_check_branch
      %10 = sbr.rel (0) target = $region5
    $region4: #{multihead_attention_vitno.5} parent=1 // pred_region
      _
    $region5: #{multihead_attention_vitno.5} parent=1 // pred_fallthru
      _
    // Predicated region
    $region6: #{multihead_attention_vitno.5} parent=1 // pred_check
      _
    $region7: #{multihead_attention_vitno.5} parent=1 // pred_check_branch
      %12 = sbr.rel (0) target = $region9
    $region8: #{multihead_attention_vitno.5} parent=1 // pred_region
      _
    $region9: #{multihead_attention_vitno.5} parent=1 // pred_fallthru
      _
    // Predicated region
    $region10: #{multihead_attention_vitno.5} parent=1 // pred_check
      _
    $region11: #{multihead_attention_vitno.5} parent=1 // pred_check_branch
      %14 = sbr.rel (0) target = $region13
    $region12: #{multihead_attention_vitno.5} parent=1 // pred_region
      _
    $region13: #{multihead_attention_vitno.5} parent=1 // pred_fallthru
      _
    %v15 = vld [vmem:[%s0] sm:$0xff]
    %v16 = vld [vmem:[%s0 + $0x8] sm:$0xff]
    %v17 = vld [vmem:[%s0 + $0x10] sm:$0xff]
    %v18 = vld [vmem:[%s0 + $0x18] sm:$0xff]
    %v19 = vld [vmem:[%s0 + $0x20] sm:$0xff]
    %v20 = vld [vmem:[%s0 + $0x28] sm:$0xff]
    %v21 = vld [vmem:[%s0 + $0x30] sm:$0xff]
    %v22 = vld [vmem:[%s0 + $0x38] sm:$0xff]
    %v23 = vld [vmem:[%s0 + $0x40] sm:$0xff]
    %v24 = vld [vmem:[%s0 + $0x48] sm:$0xff]
    %v25 = vld [vmem:[%s0 + $0x50] sm:$0xff]
    %v26 = vld [vmem:[%s0 + $0x58] sm:$0xff]
    %v27 = vld [vmem:[%s0 + $0x60] sm:$0xff]
    %v28 = vld [vmem:[%s0 + $0x68] sm:$0xff]
    %v29 = vld [vmem:[%s0 + $0x70] sm:$0xff]
    %v30 = vld [vmem:[%s0 + $0x78] sm:$0xff]
    %v31 = vld [vmem:[%s0 + $0x80] sm:$0xff]
    %v32 = vld [vmem:[%s0 + $0x88] sm:$0xff]
    %v33 = vld [vmem:[%s0 + $0x90] sm:$0xff]
    %v34 = vld [vmem:[%s0 + $0x98] sm:$0xff]
    %v35 = vld [vmem:[%s0 + $0xa0] sm:$0xff]
    %v36 = vld [vmem:[%s0 + $0xa8] sm:$0xff]
    %v37 = vld [vmem:[%s0 + $0xb0] sm:$0xff]
    %v38 = vld [vmem:[%s0 + $0xb8] sm:$0xff]
    %v39 = vld [vmem:[%s0 + $0xc0] sm:$0xff]
    %v40 = vld [vmem:[%s0 + $0xc8] sm:$0xff]
    %v41 = vld [vmem:[%s0 + $0xd0] sm:$0xff]
    %v42 = vld [vmem:[%s0 + $0xd8] sm:$0xff]
    %v43 = vld [vmem:[%s0 + $0xe0] sm:$0xff]
    %v44 = vld [vmem:[%s0 + $0xe8] sm:$0xff]
    %v45 = vld [vmem:[%s0 + $0xf0] sm:$0xff]
    %v46 = vld [vmem:[%s0 + $0xf8] sm:$0xff]
    %v47 = vld [vmem:[%s0 + $0x100] sm:$0xff]
    %v48 = vld [vmem:[%s0 + $0x108] sm:$0xff]
    %v49 = vld [vmem:[%s0 + $0x110] sm:$0xff]
    %v50 = vld [vmem:[%s0 + $0x118] sm:$0xff]
    %v51 = vld [vmem:[%s0 + $0x120] sm:$0xff]
    %v52 = vld [vmem:[%s0 + $0x128] sm:$0xff]
    %v53 = vld [vmem:[%s0 + $0x130] sm:$0xff]
    %v54 = vld [vmem:[%s0 + $0x138] sm:$0xff]
    %v55 = vld [vmem:[%s0 + $0x140] sm:$0xff]
    %v56 = vld [vmem:[%s0 + $0x148] sm:$0xff]
    %v57 = vld [vmem:[%s0 + $0x150] sm:$0xff]
    %v58 = vld [vmem:[%s0 + $0x158] sm:$0xff]
    %v59 = vld [vmem:[%s0 + $0x160] sm:$0xff]
    %v60 = vld [vmem:[%s0 + $0x168] sm:$0xff]
    %v61 = vld [vmem:[%s0 + $0x170] sm:$0xff]
    %v62 = vld [vmem:[%s0 + $0x178] sm:$0xff]
    %v63 = vld [vmem:[%s0 + $0x180] sm:$0xff]
    %v64 = vld [vmem:[%s0 + $0x188] sm:$0xff]
    %v65 = vld [vmem:[%s0 + $0x190] sm:$0xff]
    %v66 = vld [vmem:[%s0 + $0x198] sm:$0xff]
    %v67 = vld [vmem:[%s0 + $0x1a0] sm:$0xff]
    %v68 = vld [vmem:[%s0 + $0x1a8] sm:$0xff]
    %v69 = vld [vmem:[%s0 + $0x1b0] sm:$0xff]
    %v70 = vld [vmem:[%s0 + $0x1b8] sm:$0xff]
    %v71 = vld [vmem:[%s0 + $0x1c0] sm:$0xff]
    %v72 = vld [vmem:[%s0 + $0x1c8] sm:$0xff]
    %v73 = vld [vmem:[%s0 + $0x1d0] sm:$0xff]
    %v74 = vld [vmem:[%s0 + $0x1d8] sm:$0xff]
    %v75 = vld [vmem:[%s0 + $0x1e0] sm:$0xff]
    %v76 = vld [vmem:[%s0 + $0x1e8] sm:$0xff]
    %v77 = vld [vmem:[%s0 + $0x1f0] sm:$0xff]
    %v78 = vld [vmem:[%s0 + $0x1f8] sm:$0xff]
    %v79 = vld [vmem:[%s1] sm:$0xff]
    %v80 = vld [vmem:[%s1 + $0x8] sm:$0xff]
    %v81 = vld [vmem:[%s1 + $0x10] sm:$0xff]
    %v82 = vld [vmem:[%s1 + $0x18] sm:$0xff]
    %v83 = vld [vmem:[%s2] sm:$0x1]
    %v85 = vperm.slane %v83, 0
    %vm87 = vcmask 261120
    %v89 = vsel %vm87, %v15, 0
    %v92 = vsel %vm87, %v16, 0
    %v95 = vsel %vm87, %v17, 0
    %v98 = vsel %vm87, %v18, 0
    %v101 = vsel %vm87, %v19, 0
    %v104 = vsel %vm87, %v20, 0
    %v107 = vsel %vm87, %v21, 0
    %v110 = vsel %vm87, %v22, 0
    %v113 = vsel %vm87, %v23, 0
    %v116 = vsel %vm87, %v24, 0
    %v119 = vsel %vm87, %v25, 0
    %v122 = vsel %vm87, %v26, 0
    %v125 = vsel %vm87, %v27, 0
    %v128 = vsel %vm87, %v28, 0
    %v131 = vsel %vm87, %v29, 0
    %v134 = vsel %vm87, %v30, 0
    %v137 = vsel %vm87, %v31, 0
    %v140 = vsel %vm87, %v32, 0
    %v143 = vsel %vm87, %v33, 0
    %v146 = vsel %vm87, %v34, 0
    %v149 = vsel %vm87, %v35, 0
    %v152 = vsel %vm87, %v36, 0
    %v155 = vsel %vm87, %v37, 0
    %v158 = vsel %vm87, %v38, 0
    %v161 = vsel %vm87, %v39, 0
    %v164 = vsel %vm87, %v40, 0
    %v167 = vsel %vm87, %v41, 0
    %v170 = vsel %vm87, %v42, 0
    %v173 = vsel %vm87, %v43, 0
    %v176 = vsel %vm87, %v44, 0
    %v179 = vsel %vm87, %v45, 0
    %v182 = vsel %vm87, %v46, 0
    %v185 = vsel %vm87, %v47, 0
    %v188 = vsel %vm87, %v48, 0
    %v191 = vsel %vm87, %v49, 0
    %v194 = vsel %vm87, %v50, 0
    %v197 = vsel %vm87, %v51, 0
    %v200 = vsel %vm87, %v52, 0
    %v203 = vsel %vm87, %v53, 0
    %v206 = vsel %vm87, %v54, 0
    %v209 = vsel %vm87, %v55, 0
    %v212 = vsel %vm87, %v56, 0
    %v215 = vsel %vm87, %v57, 0
    %v218 = vsel %vm87, %v58, 0
    %v221 = vsel %vm87, %v59, 0
    %v224 = vsel %vm87, %v60, 0
    %v227 = vsel %vm87, %v61, 0
    %v230 = vsel %vm87, %v62, 0
    %v233 = vsel %vm87, %v63, 0
    %v236 = vsel %vm87, %v64, 0
    %v239 = vsel %vm87, %v65, 0
    %v242 = vsel %vm87, %v66, 0
    %v245 = vsel %vm87, %v67, 0
    %v248 = vsel %vm87, %v68, 0
    %v251 = vsel %vm87, %v69, 0
    %v254 = vsel %vm87, %v70, 0
    %v257 = vsel %vm87, %v71, 0
    %v260 = vsel %vm87, %v72, 0
    %v263 = vsel %vm87, %v73, 0
    %v266 = vsel %vm87, %v74, 0
    %v269 = vsel %vm87, %v75, 0
    %v272 = vsel %vm87, %v76, 0
    %v275 = vsel %vm87, %v77, 0
    %v278 = vsel %vm87, %v78, 0
    %280 = vmatpush.msra.mxu0 0.0
    %281 = vmatpush.msra.mxu0 0.0
    %282 = vmatpush.msra.mxu0 0.0
    %283 = vmatpush.msra.mxu0 0.0
    %284 = vmatpush.msra.mxu0 0.0
    %285 = vmatpush.msra.mxu0 0.0
    %286 = vmatpush.msra.mxu0 0.0
    %287 = vmatpush.msra.mxu0 0.0
    %288 = vmatpush.msra.mxu0 0.0
    %289 = vmatpush.msra.mxu0 0.0
    %290 = vmatpush.msra.mxu0 0.0
    %291 = vmatpush.msra.mxu0 0.0
    %292 = vmatpush.msra.mxu0 %v82
    %293 = vmatpush.msra.mxu0 %v81
    %294 = vmatpush.msra.mxu0 %v80
    %295 = vmatpush.msra.mxu0 %v79
    %296 = vmatmul.f32.gmra.mxu0 %v89
    %v297 = vpop.f32.mrf.mxu0
    %v298 = vadd.f32 %v85, %v297
    %299 = vmatmul.f32.gmra.mxu0 %v92
    %v300 = vpop.f32.mrf.mxu0
    %v301 = vadd.f32 %v85, %v300
    %302 = vmatmul.f32.gmra.mxu0 %v95
    %v303 = vpop.f32.mrf.mxu0
    %v304 = vadd.f32 %v85, %v303
    %305 = vmatmul.f32.gmra.mxu0 %v98
    %v306 = vpop.f32.mrf.mxu0
    %v307 = vadd.f32 %v85, %v306
    %308 = vmatmul.f32.gmra.mxu0 %v101
    %v309 = vpop.f32.mrf.mxu0
    %v310 = vadd.f32 %v85, %v309
    %311 = vmatmul.f32.gmra.mxu0 %v104
    %v312 = vpop.f32.mrf.mxu0
    %v313 = vadd.f32 %v85, %v312
    %314 = vmatmul.f32.gmra.mxu0 %v107
    %v315 = vpop.f32.mrf.mxu0
    %v316 = vadd.f32 %v85, %v315
    %317 = vmatmul.f32.gmra.mxu0 %v110
    %v318 = vpop.f32.mrf.mxu0
    %v319 = vadd.f32 %v85, %v318
    %320 = vmatmul.f32.gmra.mxu0 %v113
    %v321 = vpop.f32.mrf.mxu0
    %v322 = vadd.f32 %v85, %v321
    %323 = vmatmul.f32.gmra.mxu0 %v116
    %v324 = vpop.f32.mrf.mxu0
    %v325 = vadd.f32 %v85, %v324
    %326 = vmatmul.f32.gmra.mxu0 %v119
    %v327 = vpop.f32.mrf.mxu0
    %v328 = vadd.f32 %v85, %v327
    %329 = vmatmul.f32.gmra.mxu0 %v122
    %v330 = vpop.f32.mrf.mxu0
    %v331 = vadd.f32 %v85, %v330
    %332 = vmatmul.f32.gmra.mxu0 %v125
    %v333 = vpop.f32.mrf.mxu0
    %v334 = vadd.f32 %v85, %v333
    %335 = vmatmul.f32.gmra.mxu0 %v128
    %v336 = vpop.f32.mrf.mxu0
    %v337 = vadd.f32 %v85, %v336
    %338 = vmatmul.f32.gmra.mxu0 %v131
    %v339 = vpop.f32.mrf.mxu0
    %v340 = vadd.f32 %v85, %v339
    %341 = vmatmul.f32.gmra.mxu0 %v134
    %v342 = vpop.f32.mrf.mxu0
    %v343 = vadd.f32 %v85, %v342
    %344 = vmatmul.f32.gmra.mxu0 %v137
    %v345 = vpop.f32.mrf.mxu0
    %v346 = vadd.f32 %v85, %v345
    %347 = vmatmul.f32.gmra.mxu0 %v140
    %v348 = vpop.f32.mrf.mxu0
    %v349 = vadd.f32 %v85, %v348
    %350 = vmatmul.f32.gmra.mxu0 %v143
    %v351 = vpop.f32.mrf.mxu0
    %v352 = vadd.f32 %v85, %v351
    %353 = vmatmul.f32.gmra.mxu0 %v146
    %v354 = vpop.f32.mrf.mxu0
    %v355 = vadd.f32 %v85, %v354
    %356 = vmatmul.f32.gmra.mxu0 %v149
    %v357 = vpop.f32.mrf.mxu0
    %v358 = vadd.f32 %v85, %v357
    %359 = vmatmul.f32.gmra.mxu0 %v152
    %v360 = vpop.f32.mrf.mxu0
    %v361 = vadd.f32 %v85, %v360
    %362 = vmatmul.f32.gmra.mxu0 %v155
    %v363 = vpop.f32.mrf.mxu0
    %v364 = vadd.f32 %v85, %v363
    %365 = vmatmul.f32.gmra.mxu0 %v158
    %v366 = vpop.f32.mrf.mxu0
    %v367 = vadd.f32 %v85, %v366
    %368 = vmatmul.f32.gmra.mxu0 %v161
    %v369 = vpop.f32.mrf.mxu0
    %v370 = vadd.f32 %v85, %v369
    %371 = vmatmul.f32.gmra.mxu0 %v164
    %v372 = vpop.f32.mrf.mxu0
    %v373 = vadd.f32 %v85, %v372
    %374 = vmatmul.f32.gmra.mxu0 %v167
    %v375 = vpop.f32.mrf.mxu0
    %v376 = vadd.f32 %v85, %v375
    %377 = vmatmul.f32.gmra.mxu0 %v170
    %v378 = vpop.f32.mrf.mxu0
    %v379 = vadd.f32 %v85, %v378
    %380 = vmatmul.f32.gmra.mxu0 %v173
    %v381 = vpop.f32.mrf.mxu0
    %v382 = vadd.f32 %v85, %v381
    %383 = vmatmul.f32.gmra.mxu0 %v176
    %v384 = vpop.f32.mrf.mxu0
    %v385 = vadd.f32 %v85, %v384
    %386 = vmatmul.f32.gmra.mxu0 %v179
    %v387 = vpop.f32.mrf.mxu0
    %v388 = vadd.f32 %v85, %v387
    %389 = vmatmul.f32.gmra.mxu0 %v182
    %v390 = vpop.f32.mrf.mxu0
    %v391 = vadd.f32 %v85, %v390
    %392 = vmatmul.f32.gmra.mxu0 %v185
    %v393 = vpop.f32.mrf.mxu0
    %v394 = vadd.f32 %v85, %v393
    %395 = vmatmul.f32.gmra.mxu0 %v188
    %v396 = vpop.f32.mrf.mxu0
    %v397 = vadd.f32 %v85, %v396
    %398 = vmatmul.f32.gmra.mxu0 %v191
    %v399 = vpop.f32.mrf.mxu0
    %v400 = vadd.f32 %v85, %v399
    %401 = vmatmul.f32.gmra.mxu0 %v194
    %v402 = vpop.f32.mrf.mxu0
    %v403 = vadd.f32 %v85, %v402
    %404 = vmatmul.f32.gmra.mxu0 %v197
    %v405 = vpop.f32.mrf.mxu0
    %v406 = vadd.f32 %v85, %v405
    %407 = vmatmul.f32.gmra.mxu0 %v200
    %v408 = vpop.f32.mrf.mxu0
    %v409 = vadd.f32 %v85, %v408
    %410 = vmatmul.f32.gmra.mxu0 %v203
    %v411 = vpop.f32.mrf.mxu0
    %v412 = vadd.f32 %v85, %v411
    %413 = vmatmul.f32.gmra.mxu0 %v206
    %v414 = vpop.f32.mrf.mxu0
    %v415 = vadd.f32 %v85, %v414
    %416 = vmatmul.f32.gmra.mxu0 %v209
    %v417 = vpop.f32.mrf.mxu0
    %v418 = vadd.f32 %v85, %v417
    %419 = vmatmul.f32.gmra.mxu0 %v212
    %v420 = vpop.f32.mrf.mxu0
    %v421 = vadd.f32 %v85, %v420
    %422 = vmatmul.f32.gmra.mxu0 %v215
    %v423 = vpop.f32.mrf.mxu0
    %v424 = vadd.f32 %v85, %v423
    %425 = vmatmul.f32.gmra.mxu0 %v218
    %v426 = vpop.f32.mrf.mxu0
    %v427 = vadd.f32 %v85, %v426
    %428 = vmatmul.f32.gmra.mxu0 %v221
    %v429 = vpop.f32.mrf.mxu0
    %v430 = vadd.f32 %v85, %v429
    %431 = vmatmul.f32.gmra.mxu0 %v224
    %v432 = vpop.f32.mrf.mxu0
    %v433 = vadd.f32 %v85, %v432
    %434 = vmatmul.f32.gmra.mxu0 %v227
    %v435 = vpop.f32.mrf.mxu0
    %v436 = vadd.f32 %v85, %v435
    %437 = vmatmul.f32.gmra.mxu0 %v230
    %v438 = vpop.f32.mrf.mxu0
    %v439 = vadd.f32 %v85, %v438
    %440 = vmatmul.f32.gmra.mxu0 %v233
    %v441 = vpop.f32.mrf.mxu0
    %v442 = vadd.f32 %v85, %v441
    %443 = vmatmul.f32.gmra.mxu0 %v236
    %v444 = vpop.f32.mrf.mxu0
    %v445 = vadd.f32 %v85, %v444
    %446 = vmatmul.f32.gmra.mxu0 %v239
    %v447 = vpop.f32.mrf.mxu0
    %v448 = vadd.f32 %v85, %v447
    %449 = vmatmul.f32.gmra.mxu0 %v242
    %v450 = vpop.f32.mrf.mxu0
    %v451 = vadd.f32 %v85, %v450
    %452 = vmatmul.f32.gmra.mxu0 %v245
    %v453 = vpop.f32.mrf.mxu0
    %v454 = vadd.f32 %v85, %v453
    %455 = vmatmul.f32.gmra.mxu0 %v248
    %v456 = vpop.f32.mrf.mxu0
    %v457 = vadd.f32 %v85, %v456
    %458 = vmatmul.f32.gmra.mxu0 %v251
    %v459 = vpop.f32.mrf.mxu0
    %v460 = vadd.f32 %v85, %v459
    %461 = vmatmul.f32.gmra.mxu0 %v254
    %v462 = vpop.f32.mrf.mxu0
    %v463 = vadd.f32 %v85, %v462
    %464 = vmatmul.f32.gmra.mxu0 %v257
    %v465 = vpop.f32.mrf.mxu0
    %v466 = vadd.f32 %v85, %v465
    %467 = vmatmul.f32.gmra.mxu0 %v260
    %v468 = vpop.f32.mrf.mxu0
    %v469 = vadd.f32 %v85, %v468
    %470 = vmatmul.f32.gmra.mxu0 %v263
    %v471 = vpop.f32.mrf.mxu0
    %v472 = vadd.f32 %v85, %v471
    %473 = vmatmul.f32.gmra.mxu0 %v266
    %v474 = vpop.f32.mrf.mxu0
    %v475 = vadd.f32 %v85, %v474
    %476 = vmatmul.f32.gmra.mxu0 %v269
    %v477 = vpop.f32.mrf.mxu0
    %v478 = vadd.f32 %v85, %v477
    %479 = vmatmul.f32.gmra.mxu0 %v272
    %v480 = vpop.f32.mrf.mxu0
    %v481 = vadd.f32 %v85, %v480
    %482 = vmatmul.f32.gmra.mxu0 %v275
    %v483 = vpop.f32.mrf.mxu0
    %v484 = vadd.f32 %v85, %v483
    %485 = vmatmul.f32.gmra.mxu0 %v278
    %v486 = vpop.f32.mrf.mxu0
    %v487 = vadd.f32 %v85, %v486
    %488 = vdwg.mxu0
    %489 = vst.msk [vmem:[#allocation2] sm:$0xff] %vm87, %v298
    %490 = vst.msk [vmem:[#allocation2 + $0x8] sm:$0xff] %vm87, %v301
    %491 = vst.msk [vmem:[#allocation2 + $0x10] sm:$0xff] %vm87, %v304
    %492 = vst.msk [vmem:[#allocation2 + $0x18] sm:$0xff] %vm87, %v307
    %493 = vst.msk [vmem:[#allocation2 + $0x20] sm:$0xff] %vm87, %v310
    %494 = vst.msk [vmem:[#allocation2 + $0x28] sm:$0xff] %vm87, %v313
    %495 = vst.msk [vmem:[#allocation2 + $0x30] sm:$0xff] %vm87, %v316
    %496 = vst.msk [vmem:[#allocation2 + $0x38] sm:$0xff] %vm87, %v319
    %497 = vst.msk [vmem:[#allocation2 + $0x40] sm:$0xff] %vm87, %v322
    %498 = vst.msk [vmem:[#allocation2 + $0x48] sm:$0xff] %vm87, %v325
    %499 = vst.msk [vmem:[#allocation2 + $0x50] sm:$0xff] %vm87, %v328
    %500 = vst.msk [vmem:[#allocation2 + $0x58] sm:$0xff] %vm87, %v331
    %501 = vst.msk [vmem:[#allocation2 + $0x60] sm:$0xff] %vm87, %v334
    %502 = vst.msk [vmem:[#allocation2 + $0x68] sm:$0xff] %vm87, %v337
    %503 = vst.msk [vmem:[#allocation2 + $0x70] sm:$0xff] %vm87, %v340
    %504 = vst.msk [vmem:[#allocation2 + $0x78] sm:$0xff] %vm87, %v343
    %505 = vst.msk [vmem:[#allocation2 + $0x80] sm:$0xff] %vm87, %v346
    %506 = vst.msk [vmem:[#allocation2 + $0x88] sm:$0xff] %vm87, %v349
    %507 = vst.msk [vmem:[#allocation2 + $0x90] sm:$0xff] %vm87, %v352
    %508 = vst.msk [vmem:[#allocation2 + $0x98] sm:$0xff] %vm87, %v355
    %509 = vst.msk [vmem:[#allocation2 + $0xa0] sm:$0xff] %vm87, %v358
    %510 = vst.msk [vmem:[#allocation2 + $0xa8] sm:$0xff] %vm87, %v361
    %511 = vst.msk [vmem:[#allocation2 + $0xb0] sm:$0xff] %vm87, %v364
    %512 = vst.msk [vmem:[#allocation2 + $0xb8] sm:$0xff] %vm87, %v367
    %513 = vst.msk [vmem:[#allocation2 + $0xc0] sm:$0xff] %vm87, %v370
    %514 = vst.msk [vmem:[#allocation2 + $0xc8] sm:$0xff] %vm87, %v373
    %515 = vst.msk [vmem:[#allocation2 + $0xd0] sm:$0xff] %vm87, %v376
    %516 = vst.msk [vmem:[#allocation2 + $0xd8] sm:$0xff] %vm87, %v379
    %517 = vst.msk [vmem:[#allocation2 + $0xe0] sm:$0xff] %vm87, %v382
    %518 = vst.msk [vmem:[#allocation2 + $0xe8] sm:$0xff] %vm87, %v385
    %519 = vst.msk [vmem:[#allocation2 + $0xf0] sm:$0xff] %vm87, %v388
    %520 = vst.msk [vmem:[#allocation2 + $0xf8] sm:$0xff] %vm87, %v391
    %521 = vst.msk [vmem:[#allocation2 + $0x100] sm:$0xff] %vm87, %v394
    %522 = vst.msk [vmem:[#allocation2 + $0x108] sm:$0xff] %vm87, %v397
    %523 = vst.msk [vmem:[#allocation2 + $0x110] sm:$0xff] %vm87, %v400
    %524 = vst.msk [vmem:[#allocation2 + $0x118] sm:$0xff] %vm87, %v403
    %525 = vst.msk [vmem:[#allocation2 + $0x120] sm:$0xff] %vm87, %v406
    %526 = vst.msk [vmem:[#allocation2 + $0x128] sm:$0xff] %vm87, %v409
    %527 = vst.msk [vmem:[#allocation2 + $0x130] sm:$0xff] %vm87, %v412
    %528 = vst.msk [vmem:[#allocation2 + $0x138] sm:$0xff] %vm87, %v415
    %529 = vst.msk [vmem:[#allocation2 + $0x140] sm:$0xff] %vm87, %v418
    %530 = vst.msk [vmem:[#allocation2 + $0x148] sm:$0xff] %vm87, %v421
    %531 = vst.msk [vmem:[#allocation2 + $0x150] sm:$0xff] %vm87, %v424
    %532 = vst.msk [vmem:[#allocation2 + $0x158] sm:$0xff] %vm87, %v427
    %533 = vst.msk [vmem:[#allocation2 + $0x160] sm:$0xff] %vm87, %v430
    %534 = vst.msk [vmem:[#allocation2 + $0x168] sm:$0xff] %vm87, %v433
    %535 = vst.msk [vmem:[#allocation2 + $0x170] sm:$0xff] %vm87, %v436
    %536 = vst.msk [vmem:[#allocation2 + $0x178] sm:$0xff] %vm87, %v439
    %537 = vst.msk [vmem:[#allocation2 + $0x180] sm:$0xff] %vm87, %v442
    %538 = vst.msk [vmem:[#allocation2 + $0x188] sm:$0xff] %vm87, %v445
    %539 = vst.msk [vmem:[#allocation2 + $0x190] sm:$0xff] %vm87, %v448
    %540 = vst.msk [vmem:[#allocation2 + $0x198] sm:$0xff] %vm87, %v451
    %541 = vst.msk [vmem:[#allocation2 + $0x1a0] sm:$0xff] %vm87, %v454
    %542 = vst.msk [vmem:[#allocation2 + $0x1a8] sm:$0xff] %vm87, %v457
    %543 = vst.msk [vmem:[#allocation2 + $0x1b0] sm:$0xff] %vm87, %v460
    %544 = vst.msk [vmem:[#allocation2 + $0x1b8] sm:$0xff] %vm87, %v463
    %545 = vst.msk [vmem:[#allocation2 + $0x1c0] sm:$0xff] %vm87, %v466
    %546 = vst.msk [vmem:[#allocation2 + $0x1c8] sm:$0xff] %vm87, %v469
    %547 = vst.msk [vmem:[#allocation2 + $0x1d0] sm:$0xff] %vm87, %v472
    %548 = vst.msk [vmem:[#allocation2 + $0x1d8] sm:$0xff] %vm87, %v475
    %549 = vst.msk [vmem:[#allocation2 + $0x1e0] sm:$0xff] %vm87, %v478
    %550 = vst.msk [vmem:[#allocation2 + $0x1e8] sm:$0xff] %vm87, %v481
    %551 = vst.msk [vmem:[#allocation2 + $0x1f0] sm:$0xff] %vm87, %v484
    %552 = vst.msk [vmem:[#allocation2 + $0x1f8] sm:$0xff] %vm87, %v487
    // Predicated region
    $region14: #{multihead_attention_vitno.5} parent=1 // pred_check
      _
    $region15: #{multihead_attention_vitno.5} parent=1 // pred_check_branch
      %554 = sbr.rel (0) target = $region17
    $region16: #{multihead_attention_vitno.5} parent=1 // pred_region
      %556 = vsyncadd [#allocation3], 0
      %s557 = sshll.u32 [#allocation2], 4
      %s558 = int_to_ptr.vmem [resolvable:$true] %s557
      %s559 = sshll.u32 %s3, 4
      %s560 = int_to_ptr.hbm [resolvable:$true] %s559
      %565 = dma.vmem_to_hbm [thread:$0]  %s558, 8192, %s560, [#allocation3], 128, 128, 8
    $region17: #{multihead_attention_vitno.5} parent=1 // pred_fallthru
      _
    // Predicated region
    $region18: #{multihead_attention_vitno.5} parent=1 // pred_check
      _
    $region19: #{multihead_attention_vitno.5} parent=1 // pred_check_branch
      %567 = sbr.rel (0) target = $region21
    $region20: #{multihead_attention_vitno.5} parent=1 // pred_region
      %569 = dma.done [#allocation3], 8192
    $region21: #{multihead_attention_vitno.5} parent=1 // pred_fallthru
      _
    %570 = vsyncpa [#allocation3], 1

</llo_original>
